<compile_context>
chip_gen: v6e
topology: v6e:2x2x1
jax: 0.10.0
libtpu: 0.0.40
codegen_flags: <defaults>
</compile_context>

<pallas_src>
import functools

import jax
import jax.numpy as jnp
from jax.experimental import pallas as pl
from jax.experimental.pallas import tpu as pltpu

L1_COEFF = 0.001   # default l1_coeff in ModifiedImageController.__init__


def _round_up(v, m):
    return (v + m - 1) // m * m


def _vmem_limit_bytes():
    """Generation-aware VMEM budget (≈3/4 of physical, capped at 100 MiB)."""
    try:
        cap = pltpu.get_tpu_info().vmem_capacity_bytes
    except Exception:
        cap = 128 * 1024 * 1024
    return int(min(cap * 3 // 4, 100 * 1024 * 1024))


def _pick_tb(batch, n_patches, kp, vmem_budget):
    """Largest batch-tile (multiple of 8, <=256) whose double-buffered patches tile
    stays within ~1/3 of the VMEM budget, capped by the (padded) batch."""
    per_row = n_patches * kp * 2 * 2           # bf16, double-buffered
    cap = max(8, (vmem_budget // 3) // max(per_row, 1))
    tb = min(256, (cap // 8) * 8, _round_up(batch, 8))
    return max(8, (tb // 8) * 8)


def _pick_th(hidden, d, vmem_budget):
    """Largest hidden tile (divisor of hidden, multiple of 128) whose double-buffered
    enc/dec weight tiles fit comfortably in VMEM."""
    assert hidden % 128 == 0, "SAE hidden dim must be a multiple of 128"
    for cand in (2048, 1024, 512, 256, 128):
        if hidden % cand == 0 and (2 * d * cand * 2) * 2 <= vmem_budget // 4:
            return cand
    return 128


# ----------------------------------------------------------------------------------
# Shared encoder math (synthetic CLIP-style visual encoder):
#   patch-embed matmul + ReLU -> mean pool over patches -> linear projection.
# All MXU operands are bf16; accumulation and elementwise math are f32.
# Works for a single head or for both heads fused (concatenated widths).
# ----------------------------------------------------------------------------------
def _encode(p_bf16, wp_ref, bp_ref, wq_ref, bq_ref, tb, n_patches):
    hid = jnp.dot(p_bf16, wp_ref[...], preferred_element_type=jnp.float32)
    hid = jnp.maximum(hid + bp_ref[...], 0.0)                    # (tb*NP, W) f32
    width = hid.shape[-1]
    pooled = jnp.sum(hid.reshape(tb, n_patches, width), axis=1) * (1.0 / n_patches)
    return (jnp.dot(pooled.astype(jnp.bfloat16), wq_ref[...],
                    preferred_element_type=jnp.float32) + bq_ref[...])


# ----------------------------------------------------------------------------------
# Fused kernel: both encoder heads (one full-width MXU pass each, at h == 0)
# + SAE tiled over the hidden dim with VMEM-resident output accumulators.
# ----------------------------------------------------------------------------------
def _fused_kernel(patches_ref, wpe_ref, bpe_ref, wproj_ref, bproj_ref,
                  bpre_ref, wenc_ref, benc_ref, wdec_ref,
                  content_ref, degra_ref, decoded_ref, l1_ref,
                  *rest, tb, n_patches, d, emit_learned):
    if emit_learned:
        learned_ref, centred_sc = rest
    else:
        (centred_sc,) = rest
        learned_ref = None

    h_idx = pl.program_id(1)

    @pl.when(h_idx == 0)
    def _():
        # Both encoder heads fused: concatenated patch-embed weights + block-diagonal
        # projection weights produce [content | degra] in full-width MXU passes.
        both = _encode(patches_ref[...], wpe_ref, bpe_ref, wproj_ref, bproj_ref,
                       tb, n_patches)                             # (tb, 2*d) f32
        content_ref[...] = both[:, :d]
        degra = both[:, d:]
        degra_ref[...] = degra
        centred_sc[...] = (degra - bpre_ref[...]).astype(jnp.bfloat16)
        # decoded accumulates in its VMEM-resident output block across hidden tiles;
        # seed with the tied pre-bias so no finalize step is needed.
        decoded_ref[...] = jnp.zeros(decoded_ref.shape, decoded_ref.dtype) + bpre_ref[...]
        l1_ref[...] = jnp.zeros(l1_ref.shape, l1_ref.dtype)

    # SAE for this hidden tile (runs every grid step).
    learned = jnp.maximum(
        jnp.dot(centred_sc[...], wenc_ref[...],
                preferred_element_type=jnp.float32) + benc_ref[...], 0.0)
    if emit_learned:
        learned_ref[...] = learned
    decoded_ref[...] += jnp.dot(learned.astype(jnp.bfloat16), wdec_ref[...],
                                preferred_element_type=jnp.float32)
    # Lane-dense L1 partials: fold the hidden tile into 128 lanes (VPU adds only);
    # the single cross-lane reduce happens once in the wrapper.
    t_h = learned.shape[-1]
    l1_ref[...] += jnp.sum(jnp.abs(learned).reshape(tb, t_h // 128, 128), axis=1)


def fused_controller_call(patches, wpe, bpe, wproj, bproj,
                          b_pre, w_enc, b_enc, w_dec, *,
                          n_patches, tb, t_h, emit_learned, vmem_limit):
    rows, kp = patches.shape
    b_pad = rows // n_patches
    nb = b_pad // tb
    w2 = wpe.shape[1]               # 2 * encoder width
    d2 = wproj.shape[1]             # 2 * image_dim
    d = d2 // 2
    hh = w_enc.shape[1]
    n_h = hh // t_h

    kernel = functools.partial(_fused_kernel, tb=tb, n_patches=n_patches, d=d,
                               emit_learned=emit_learned)

    out_specs = [
        pl.BlockSpec((tb, d),   lambda i, h: (i, 0)),     # content features
        pl.BlockSpec((tb, d),   lambda i, h: (i, 0)),     # degradation features
        pl.BlockSpec((tb, d),   lambda i, h: (i, 0)),     # decoded (accumulated)
        pl.BlockSpec((tb, 128), lambda i, h: (i, 0)),     # lane-dense |learned| sums
    ]
    out_shape = [
        jax.ShapeDtypeStruct((b_pad, d), jnp.float32),
        jax.ShapeDtypeStruct((b_pad, d), jnp.float32),
        jax.ShapeDtypeStruct((b_pad, d), jnp.float32),
        jax.ShapeDtypeStruct((b_pad, 128), jnp.float32),
    ]
    if emit_learned:   # only pay the big HBM write when output_hiddens=True
        out_specs.append(pl.BlockSpec((tb, t_h), lambda i, h: (i, h)))
        out_shape.append(jax.ShapeDtypeStruct((b_pad, hh), jnp.float32))

    grid_spec = pltpu.PrefetchScalarGridSpec(
        num_scalar_prefetch=0,
        grid=(nb, n_h),
        in_specs=[
            pl.BlockSpec((tb * n_patches, kp), lambda i, h: (i, 0)),  # patches
            pl.BlockSpec((kp, w2), lambda i, h: (0, 0)),              # wp || wp_c
            pl.BlockSpec((1, w2),  lambda i, h: (0, 0)),              # bp || bp_c
            pl.BlockSpec((w2, d2), lambda i, h: (0, 0)),              # blockdiag(wq, wq_c)
            pl.BlockSpec((1, d2),  lambda i, h: (0, 0)),              # bq || bq_c
            pl.BlockSpec((1, d),   lambda i, h: (0, 0)),              # b_pre
            pl.BlockSpec((d, t_h), lambda i, h: (0, h)),              # w_enc tile
            pl.BlockSpec((1, t_h), lambda i, h: (0, h)),              # b_enc tile
            pl.BlockSpec((t_h, d), lambda i, h: (h, 0)),              # w_dec tile
        ],
        out_specs=tuple(out_specs),
        scratch_shapes=[pltpu.VMEM((tb, d), jnp.bfloat16)],   # centred degra (bf16)
    )
    return pl.pallas_call(
        kernel,
        out_shape=tuple(out_shape),
        grid_spec=grid_spec,
        compiler_params=pltpu.CompilerParams(
            dimension_semantics=("parallel", "arbitrary"),
            vmem_limit_bytes=vmem_limit),
    )(patches, wpe, bpe, wproj, bproj, b_pre, w_enc, b_enc, w_dec)


# ----------------------------------------------------------------------------------
# Encoder-only kernel for the control=False path (no wasted SAE work).
# ----------------------------------------------------------------------------------
def _encoder_kernel(patches_ref, wp_ref, bp_ref, wq_ref, bq_ref, out_ref, *,
                    tb, n_patches):
    out_ref[...] = _encode(patches_ref[...], wp_ref, bp_ref, wq_ref, bq_ref,
                           tb, n_patches)


def encoder_call(patches, wp, bp, wq, bq, *, n_patches, tb, vmem_limit):
    rows, kp = patches.shape
    b_pad = rows // n_patches
    nb = b_pad // tb
    width = wp.shape[1]
    d = wq.shape[1]
    kernel = functools.partial(_encoder_kernel, tb=tb, n_patches=n_patches)
    grid_spec = pltpu.PrefetchScalarGridSpec(
        num_scalar_prefetch=0,
        grid=(nb,),
        in_specs=[
            pl.BlockSpec((tb * n_patches, kp), lambda i: (i, 0)),
            pl.BlockSpec((kp, width),          lambda i: (0, 0)),
            pl.BlockSpec((1, width),           lambda i: (0, 0)),
            pl.BlockSpec((width, d),           lambda i: (0, 0)),
            pl.BlockSpec((1, d),               lambda i: (0, 0)),
        ],
        out_specs=pl.BlockSpec((tb, d), lambda i: (i, 0)),
    )
    return pl.pallas_call(
        kernel,
        out_shape=jax.ShapeDtypeStruct((b_pad, d), jnp.float32),
        grid_spec=grid_spec,
        compiler_params=pltpu.CompilerParams(
            dimension_semantics=("parallel",),
            vmem_limit_bytes=vmem_limit),
    )(patches, wp, bp, wq, bq)


# ----------------------------------------------------------------------------------
# Glue: NCHW -> (B*num_patches, C*P*P) patch matrix, padding, bf16 weight prep.
# ----------------------------------------------------------------------------------
def extract_patches(x, patch):
    b, c, h, w = x.shape
    x = x.reshape(b, c, h // patch, patch, w // patch, patch)
    x = x.transpose(0, 2, 4, 1, 3, 5)          # (B, H/P, W/P, C, P, P)
    return x.reshape(b * (h // patch) * (w // patch), c * patch * patch)


def _prepare(x, params, patch, control):
    b, c, h, w = x.shape
    n_patches = (h // patch) * (w // patch)
    assert n_patches % 8 == 0, "patches-per-image must be a multiple of 8"
    k_raw = c * patch * patch
    k_pad = _round_up(k_raw, 128)              # keep MXU K dim 128-aligned

    vmem_limit = _vmem_limit_bytes()
    tb = _pick_tb(b, n_patches, k_pad, vmem_limit)
    b_pad = _round_up(b, tb)

    patches = extract_patches(x, patch).astype(jnp.bfloat16)
    patches = jnp.pad(patches, ((0, (b_pad - b) * n_patches), (0, k_pad - k_raw)))

    def pad_pe(key):                           # zero-pad patch-embed rows, cast bf16
        return jnp.pad(params[key], ((0, k_pad - k_raw), (0, 0))).astype(jnp.bfloat16)

    prep = dict(patches=patches, tb=tb, vmem_limit=vmem_limit)

    if control:
        width = params["wp"].shape[1]
        d = params["wq"].shape[1]
        assert d % 128 == 0, "image_dim must be a multiple of 128"
        # Fuse both encoder heads: concat patch-embed weights along output dim,
        # block-diagonal projection so one matmul yields [content | degra].
        prep["wpe"] = jnp.concatenate([pad_pe("wp"), pad_pe("wp_c")], axis=1)
        prep["bpe"] = jnp.concatenate([params["bp"], params["bp_c"]], axis=1)
        wproj = jnp.zeros((2 * width, 2 * d), jnp.float32)
        wproj = wproj.at[:width, :d].set(params["wq"])
        wproj = wproj.at[width:, d:].set(params["wq_c"])
        prep["wproj"] = wproj.astype(jnp.bfloat16)
        prep["bproj"] = jnp.concatenate([params["bq"], params["bq_c"]], axis=1)
        prep["b_pre"] = params["b_pre"]
        prep["w_enc"] = params["w_enc"].astype(jnp.bfloat16)
        prep["b_enc"] = params["b_enc"]
        prep["w_dec"] = params["w_dec"].astype(jnp.bfloat16)
    else:
        prep["wp"] = pad_pe("wp")
        prep["bp"] = params["bp"]
        prep["wq"] = params["wq"].astype(jnp.bfloat16)
        prep["bq"] = params["bq"]
    return prep, n_patches


def modified_image_controller_forward(x, params, patch, control=False,
                                      output_hiddens=False):
    b = x.shape[0]
    prep, n_patches = _prepare(x, params, patch, control)
    tb, vmem_limit = prep["tb"], prep["vmem_limit"]

    if not control:
        content = encoder_call(prep["patches"], prep["wp"], prep["bp"],
                               prep["wq"], prep["bq"],
                               n_patches=n_patches, tb=tb, vmem_limit=vmem_limit)
        return content[:b]

    d = params["wq"].shape[1]
    hh = params["w_enc"].shape[1]
    t_h = _pick_th(hh, d, vmem_limit)

    outs = fused_controller_call(
        prep["patches"], prep["wpe"], prep["bpe"], prep["wproj"], prep["bproj"],
        prep["b_pre"], prep["w_enc"], prep["b_enc"], prep["w_dec"],
        n_patches=n_patches, tb=tb, t_h=t_h,
        emit_learned=output_hiddens, vmem_limit=vmem_limit)

    if output_hiddens:
        _, degra, _, _, learned = outs
        return degra[:b], learned[:b]

    content, _, decoded, l1_rows = outs
    # exclude padded batch rows; the heavy reduction already happened in-kernel.
    l1_loss = L1_COEFF * jnp.sum(l1_rows[:b]) / (b * hh)
    return content[:b], decoded[:b], l1_loss


# ----------------------------------------------------------------------------------
# Pure-JAX reference (same bf16-operand / f32-accumulation precision policy).
# ----------------------------------------------------------------------------------
def _reference(x, params, patch):
    b, c, h, w = x.shape
    n_patches = (h // patch) * (w // patch)
    patches = extract_patches(x, patch).astype(jnp.bfloat16)

    def enc(wp, bp, wq, bq):
        hid = jnp.dot(patches, wp.astype(jnp.bfloat16),
                      preferred_element_type=jnp.float32)
        hid = jnp.maximum(hid + bp, 0.0)
        pooled = jnp.mean(hid.reshape(b, n_patches, -1), axis=1)
        return jnp.dot(pooled.astype(jnp.bfloat16), wq.astype(jnp.bfloat16),
                       preferred_element_type=jnp.float32) + bq

    content = enc(params["wp"], params["bp"], params["wq"], params["bq"])
    degra = enc(params["wp_c"], params["bp_c"], params["wq_c"], params["bq_c"])
    centred = degra - params["b_pre"]
    learned = jnp.maximum(
        jnp.dot(centred.astype(jnp.bfloat16), params["w_enc"].astype(jnp.bfloat16),
                preferred_element_type=jnp.float32) + params["b_enc"], 0.0)
    decoded = jnp.dot(learned.astype(jnp.bfloat16),
                      params["w_dec"].astype(jnp.bfloat16),
                      preferred_element_type=jnp.float32) + params["b_pre"]
    l1 = L1_COEFF * jnp.mean(jnp.abs(learned))
    return content, degra, learned, decoded, l1


if __name__ == "__main__":
    key = jax.random.PRNGKey(0)
    B, C, Himg, Wimg = 2, 3, 16, 16
    PATCH = 4
    NP = (Himg // PATCH) * (Wimg // PATCH)   # 16 patches per image
    PATCH_DIM = C * PATCH * PATCH            # 48
    WIDTH = 128                              # encoder internal width
    IMAGE_DIM = 128                          # image_dim
    HIDDEN = IMAGE_DIM * 8                   # hidden_dim = image_dim * expansion

    ks = jax.random.split(key, 10)
    x = jax.random.normal(ks[0], (B, C, Himg, Wimg), jnp.float32)

    wp = jax.random.normal(ks[1], (PATCH_DIM, WIDTH), jnp.float32) * 0.05
    bp = jax.random.normal(ks[2], (1, WIDTH), jnp.float32) * 0.01
    wq = jax.random.normal(ks[3], (WIDTH, IMAGE_DIM), jnp.float32) * 0.05
    bq = jax.random.normal(ks[4], (1, IMAGE_DIM), jnp.float32) * 0.01

    params = dict(
        wp=wp, bp=bp, wq=wq, bq=bq,
        # copy_encoder = deepcopy(image_encoder) -> identical weights at init.
        wp_c=wp, bp_c=bp, wq_c=wq, bq_c=bq,
        # SAE parameters; b_pre plays the role of the tied / geometric-median bias.
        b_pre=jax.random.normal(ks[7], (1, IMAGE_DIM), jnp.float32) * 0.01,
        w_enc=jax.random.normal(ks[5], (IMAGE_DIM, HIDDEN), jnp.float32) * 0.05,
        b_enc=jax.random.normal(ks[8], (1, HIDDEN), jnp.float32) * 0.01,
        w_dec=jax.random.normal(ks[6], (HIDDEN, IMAGE_DIM), jnp.float32) * 0.05,
    )

    # TODO(synk): the real `image_encoder` / its `transformer` are external modules
    # passed into __init__; a synthetic patch-embed + pool + projection encoder with
    # deterministic weights stands in for them here.

    fwd = jax.jit(modified_image_controller_forward,
                  static_argnames=("patch", "control", "output_hiddens"))

    ref_content, ref_degra, ref_learned, ref_decoded, ref_l1 = _reference(x, params, PATCH)

    # control=True, output_hiddens=False (main path).
    content, decoded, l1 = jax.block_until_ready(
        fwd(x, params, patch=PATCH, control=True))
    assert content.shape == (B, IMAGE_DIM) and decoded.shape == (B, IMAGE_DIM)
    assert jnp.allclose(content, ref_content, atol=2e-3, rtol=2e-3)
    assert jnp.allclose(decoded, ref_decoded, atol=2e-3, rtol=2e-3)
    assert jnp.allclose(l1, ref_l1, atol=1e-7, rtol=5e-3)

    # control=True, output_hiddens=True (degra features + learned activations).
    degra_h, learned_h = jax.block_until_ready(
        fwd(x, params, patch=PATCH, control=True, output_hiddens=True))
    assert degra_h.shape == (B, IMAGE_DIM) and learned_h.shape == (B, HIDDEN)
    assert jnp.allclose(degra_h, ref_degra, atol=2e-3, rtol=2e-3)
    assert jnp.allclose(learned_h, ref_learned, atol=2e-3, rtol=2e-3)

    # control=False path (encoder-only kernel).
    content_only = jax.block_until_ready(fwd(x, params, patch=PATCH, control=False))
    assert jnp.allclose(content_only, ref_content, atol=2e-3, rtol=2e-3)

    print("KERNEL_OK")
</pallas_src>

<mosaic_0001>
module attributes {stable_mosaic.version = 11 : i64} {
  func.func @_fused_kernel(%arg0: i32, %arg1: i32, %arg2: memref<128x128xbf16, #tpu.memory_space<vmem>>, %arg3: memref<128x256xbf16, #tpu.memory_space<vmem>>, %arg4: memref<1x256xf32, #tpu.memory_space<vmem>>, %arg5: memref<256x256xbf16, #tpu.memory_space<vmem>>, %arg6: memref<1x256xf32, #tpu.memory_space<vmem>>, %arg7: memref<1x128xf32, #tpu.memory_space<vmem>>, %arg8: memref<128x1024xbf16, #tpu.memory_space<vmem>>, %arg9: memref<1x1024xf32, #tpu.memory_space<vmem>>, %arg10: memref<1024x128xbf16, #tpu.memory_space<vmem>>, %arg11: memref<8x128xf32, #tpu.memory_space<vmem>>, %arg12: memref<8x128xf32, #tpu.memory_space<vmem>>, %arg13: memref<8x128xf32, #tpu.memory_space<vmem>>, %arg14: memref<8x128xf32, #tpu.memory_space<vmem>>, %arg15: memref<8x128xbf16, #tpu.memory_space<vmem>>) attributes {dimension_semantics = [#tpu.dimension_semantics<parallel>, #tpu.dimension_semantics<arbitrary>], iteration_bounds = array<i64: 1, 1>, scalar_prefetch = 0 : i64, scratch_operands = 1 : i64, tpu.core_type = #tpu.core_type<tc>, window_params = [{transform_indices = @transform_0, window_bounds = array<i64: 128, 128>}, {pipeline_mode = #tpu.pipeline_mode<synchronous>, transform_indices = @transform_1, window_bounds = array<i64: 128, 256>}, {pipeline_mode = #tpu.pipeline_mode<synchronous>, transform_indices = @transform_2, window_bounds = array<i64: 1, 256>}, {pipeline_mode = #tpu.pipeline_mode<synchronous>, transform_indices = @transform_3, window_bounds = array<i64: 256, 256>}, {pipeline_mode = #tpu.pipeline_mode<synchronous>, transform_indices = @transform_4, window_bounds = array<i64: 1, 256>}, {pipeline_mode = #tpu.pipeline_mode<synchronous>, transform_indices = @transform_5, window_bounds = array<i64: 1, 128>}, {transform_indices = @transform_6, window_bounds = array<i64: 128, 1024>}, {transform_indices = @transform_7, window_bounds = array<i64: 1, 1024>}, {transform_indices = @transform_8, window_bounds = array<i64: 1024, 128>}, {transform_indices = @transform_9, window_bounds = array<i64: 8, 128>}, {transform_indices = @transform_10, window_bounds = array<i64: 8, 128>}, {transform_indices = @transform_11, window_bounds = array<i64: 8, 128>}, {transform_indices = @transform_12, window_bounds = array<i64: 8, 128>}]} {
    %c0_i32 = arith.constant 0 : i32
    %0 = arith.cmpi eq, %arg1, %c0_i32 : i32
    %1 = arith.extui %0 : i1 to i32
    %c0_i32_0 = arith.constant 0 : i32
    %2 = arith.cmpi ne, %1, %c0_i32_0 : i32
    scf.if %2 {
      %c0_19 = arith.constant 0 : index
      %c0_20 = arith.constant 0 : index
      %23 = vector.load %arg2[%c0_19, %c0_20] : memref<128x128xbf16, #tpu.memory_space<vmem>>, vector<128x128xbf16>
      %c0_21 = arith.constant 0 : index
      %c0_22 = arith.constant 0 : index
      %24 = vector.load %arg3[%c0_21, %c0_22] : memref<128x256xbf16, #tpu.memory_space<vmem>>, vector<128x256xbf16>
      %cst_23 = arith.constant dense<0.000000e+00> : vector<128x256xf32>
      %25 = tpu.matmul %23, %24, %cst_23 {dimension_numbers = #tpu.dot_dimension_numbers<[1], [0], [0], [1], [0, 0, 1, 1], [], []>} : vector<128x128xbf16>, vector<128x256xbf16>, vector<128x256xf32> -> vector<128x256xf32>
      %c0_24 = arith.constant 0 : index
      %c0_25 = arith.constant 0 : index
      %26 = vector.load %arg4[%c0_24, %c0_25] : memref<1x256xf32, #tpu.memory_space<vmem>>, vector<1x256xf32>
      %27 = vector.broadcast %26 : vector<1x256xf32> to vector<128x256xf32>
      %28 = arith.addf %25, %27 : vector<128x256xf32>
      %cst_26 = arith.constant 0.000000e+00 : f32
      %29 = vector.broadcast %cst_26 : f32 to vector<128x256xf32>
      %30 = arith.maximumf %28, %29 : vector<128x256xf32>
      %31 = vector.shape_cast %30 : vector<128x256xf32> to vector<8x16x256xf32>
      %cst_27 = arith.constant dense<0.000000e+00> : vector<8x256xf32>
      %32 = vector.multi_reduction <add>, %31, %cst_27 [1] : vector<8x16x256xf32> to vector<8x256xf32>
      %cst_28 = arith.constant 6.250000e-02 : f32
      %33 = vector.broadcast %cst_28 : f32 to vector<8x256xf32>
      %34 = arith.mulf %32, %33 : vector<8x256xf32>
      %35 = arith.truncf %34 : vector<8x256xf32> to vector<8x256xbf16>
      %c0_29 = arith.constant 0 : index
      %c0_30 = arith.constant 0 : index
      %36 = vector.load %arg5[%c0_29, %c0_30] : memref<256x256xbf16, #tpu.memory_space<vmem>>, vector<256x256xbf16>
      %cst_31 = arith.constant dense<0.000000e+00> : vector<8x256xf32>
      %37 = tpu.matmul %35, %36, %cst_31 {dimension_numbers = #tpu.dot_dimension_numbers<[1], [0], [0], [1], [0, 0, 1, 1], [], []>} : vector<8x256xbf16>, vector<256x256xbf16>, vector<8x256xf32> -> vector<8x256xf32>
      %c0_32 = arith.constant 0 : index
      %c0_33 = arith.constant 0 : index
      %38 = vector.load %arg6[%c0_32, %c0_33] : memref<1x256xf32, #tpu.memory_space<vmem>>, vector<1x256xf32>
      %39 = vector.broadcast %38 : vector<1x256xf32> to vector<8x256xf32>
      %40 = arith.addf %37, %39 : vector<8x256xf32>
      %41 = vector.extract_strided_slice %40 {offsets = [0, 0], sizes = [8, 128], strides = [1, 1]} : vector<8x256xf32> to vector<8x128xf32>
      %c0_34 = arith.constant 0 : index
      %c0_35 = arith.constant 0 : index
      %42 = vector.load %arg11[%c0_34, %c0_35] : memref<8x128xf32, #tpu.memory_space<vmem>>, vector<8x128xf32>
      tpu.vector_store %arg11[%c0_34, %c0_35], %41 {strides = array<i32>} : memref<8x128xf32, #tpu.memory_space<vmem>>, vector<8x128xf32>,
      %43 = vector.extract_strided_slice %40 {offsets = [0, 128], sizes = [8, 128], strides = [1, 1]} : vector<8x256xf32> to vector<8x128xf32>
      %c0_36 = arith.constant 0 : index
      %c0_37 = arith.constant 0 : index
      %44 = vector.load %arg12[%c0_36, %c0_37] : memref<8x128xf32, #tpu.memory_space<vmem>>, vector<8x128xf32>
      tpu.vector_store %arg12[%c0_36, %c0_37], %43 {strides = array<i32>} : memref<8x128xf32, #tpu.memory_space<vmem>>, vector<8x128xf32>,
      %c0_38 = arith.constant 0 : index
      %c0_39 = arith.constant 0 : index
      %45 = vector.load %arg7[%c0_38, %c0_39] : memref<1x128xf32, #tpu.memory_space<vmem>>, vector<1x128xf32>
      %46 = vector.broadcast %45 : vector<1x128xf32> to vector<8x128xf32>
      %47 = arith.subf %43, %46 : vector<8x128xf32>
      %48 = arith.truncf %47 : vector<8x128xf32> to vector<8x128xbf16>
      %c0_40 = arith.constant 0 : index
      %c0_41 = arith.constant 0 : index
      %49 = vector.load %arg15[%c0_40, %c0_41] : memref<8x128xbf16, #tpu.memory_space<vmem>>, vector<8x128xbf16>
      tpu.vector_store %arg15[%c0_40, %c0_41], %48 {strides = array<i32>} : memref<8x128xbf16, #tpu.memory_space<vmem>>, vector<8x128xbf16>,
      %cst_42 = arith.constant 0.000000e+00 : f32
      %50 = vector.broadcast %cst_42 : f32 to vector<8x128xf32>
      %c0_43 = arith.constant 0 : index
      %c0_44 = arith.constant 0 : index
      %51 = vector.load %arg7[%c0_43, %c0_44] : memref<1x128xf32, #tpu.memory_space<vmem>>, vector<1x128xf32>
      %52 = vector.broadcast %51 : vector<1x128xf32> to vector<8x128xf32>
      %53 = arith.addf %50, %52 : vector<8x128xf32>
      %c0_45 = arith.constant 0 : index
      %c0_46 = arith.constant 0 : index
      %54 = vector.load %arg13[%c0_45, %c0_46] : memref<8x128xf32, #tpu.memory_space<vmem>>, vector<8x128xf32>
      tpu.vector_store %arg13[%c0_45, %c0_46], %53 {strides = array<i32>} : memref<8x128xf32, #tpu.memory_space<vmem>>, vector<8x128xf32>,
      %cst_47 = arith.constant 0.000000e+00 : f32
      %55 = vector.broadcast %cst_47 : f32 to vector<8x128xf32>
      %c0_48 = arith.constant 0 : index
      %c0_49 = arith.constant 0 : index
      %56 = vector.load %arg14[%c0_48, %c0_49] : memref<8x128xf32, #tpu.memory_space<vmem>>, vector<8x128xf32>
      tpu.vector_store %arg14[%c0_48, %c0_49], %55 {strides = array<i32>} : memref<8x128xf32, #tpu.memory_space<vmem>>, vector<8x128xf32>,
    } else {
    }
    %c0 = arith.constant 0 : index
    %c0_1 = arith.constant 0 : index
    %3 = vector.load %arg15[%c0, %c0_1] : memref<8x128xbf16, #tpu.memory_space<vmem>>, vector<8x128xbf16>
    %c0_2 = arith.constant 0 : index
    %c0_3 = arith.constant 0 : index
    %4 = vector.load %arg8[%c0_2, %c0_3] : memref<128x1024xbf16, #tpu.memory_space<vmem>>, vector<128x1024xbf16>
    %cst = arith.constant dense<0.000000e+00> : vector<8x1024xf32>
    %5 = tpu.matmul %3, %4, %cst {dimension_numbers = #tpu.dot_dimension_numbers<[1], [0], [0], [1], [0, 0, 1, 1], [], []>} : vector<8x128xbf16>, vector<128x1024xbf16>, vector<8x1024xf32> -> vector<8x1024xf32>
    %c0_4 = arith.constant 0 : index
    %c0_5 = arith.constant 0 : index
    %6 = vector.load %arg9[%c0_4, %c0_5] : memref<1x1024xf32, #tpu.memory_space<vmem>>, vector<1x1024xf32>
    %7 = vector.broadcast %6 : vector<1x1024xf32> to vector<8x1024xf32>
    %8 = arith.addf %5, %7 : vector<8x1024xf32>
    %cst_6 = arith.constant 0.000000e+00 : f32
    %9 = vector.broadcast %cst_6 : f32 to vector<8x1024xf32>
    %10 = arith.maximumf %8, %9 : vector<8x1024xf32>
    %c0_7 = arith.constant 0 : index
    %c0_8 = arith.constant 0 : index
    %11 = vector.load %arg13[%c0_7, %c0_8] : memref<8x128xf32, #tpu.memory_space<vmem>>, vector<8x128xf32>
    %12 = arith.truncf %10 : vector<8x1024xf32> to vector<8x1024xbf16>
    %c0_9 = arith.constant 0 : index
    %c0_10 = arith.constant 0 : index
    %13 = vector.load %arg10[%c0_9, %c0_10] : memref<1024x128xbf16, #tpu.memory_space<vmem>>, vector<1024x128xbf16>
    %cst_11 = arith.constant dense<0.000000e+00> : vector<8x128xf32>
    %14 = tpu.matmul %12, %13, %cst_11 {dimension_numbers = #tpu.dot_dimension_numbers<[1], [0], [0], [1], [0, 0, 1, 1], [], []>} : vector<8x1024xbf16>, vector<1024x128xbf16>, vector<8x128xf32> -> vector<8x128xf32>
    %15 = arith.addf %11, %14 : vector<8x128xf32>
    %c0_12 = arith.constant 0 : index
    %c0_13 = arith.constant 0 : index
    %16 = vector.load %arg13[%c0_12, %c0_13] : memref<8x128xf32, #tpu.memory_space<vmem>>, vector<8x128xf32>
    tpu.vector_store %arg13[%c0_12, %c0_13], %15 {strides = array<i32>} : memref<8x128xf32, #tpu.memory_space<vmem>>, vector<8x128xf32>,
    %c0_14 = arith.constant 0 : index
    %c0_15 = arith.constant 0 : index
    %17 = vector.load %arg14[%c0_14, %c0_15] : memref<8x128xf32, #tpu.memory_space<vmem>>, vector<8x128xf32>
    %18 = math.absf %10 : vector<8x1024xf32>
    %19 = vector.shape_cast %18 : vector<8x1024xf32> to vector<8x8x128xf32>
    %cst_16 = arith.constant dense<0.000000e+00> : vector<8x128xf32>
    %20 = vector.multi_reduction <add>, %19, %cst_16 [1] : vector<8x8x128xf32> to vector<8x128xf32>
    %21 = arith.addf %17, %20 : vector<8x128xf32>
    %c0_17 = arith.constant 0 : index
    %c0_18 = arith.constant 0 : index
    %22 = vector.load %arg14[%c0_17, %c0_18] : memref<8x128xf32, #tpu.memory_space<vmem>>, vector<8x128xf32>
    tpu.vector_store %arg14[%c0_17, %c0_18], %21 {strides = array<i32>} : memref<8x128xf32, #tpu.memory_space<vmem>>, vector<8x128xf32>,
    return
  }
  func.func @transform_0(%arg0: i32, %arg1: i32) -> (i32, i32) {
    %c0_i32 = arith.constant 0 : i32
    %c0_i32_0 = arith.constant 0 : i32
    return %arg0, %c0_i32 : i32, i32
  }
  func.func @transform_1(%arg0: i32, %arg1: i32) -> (i32, i32) {
    %c0_i32 = arith.constant 0 : i32
    %c0_i32_0 = arith.constant 0 : i32
    %c0_i32_1 = arith.constant 0 : i32
    return %c0_i32, %c0_i32_0 : i32, i32
  }
  func.func @transform_2(%arg0: i32, %arg1: i32) -> (i32, i32) {
    %c0_i32 = arith.constant 0 : i32
    %c0_i32_0 = arith.constant 0 : i32
    %c0_i32_1 = arith.constant 0 : i32
    return %c0_i32, %c0_i32_0 : i32, i32
  }
  func.func @transform_3(%arg0: i32, %arg1: i32) -> (i32, i32) {
    %c0_i32 = arith.constant 0 : i32
    %c0_i32_0 = arith.constant 0 : i32
    %c0_i32_1 = arith.constant 0 : i32
    return %c0_i32, %c0_i32_0 : i32, i32
  }
  func.func @transform_4(%arg0: i32, %arg1: i32) -> (i32, i32) {
    %c0_i32 = arith.constant 0 : i32
    %c0_i32_0 = arith.constant 0 : i32
    %c0_i32_1 = arith.constant 0 : i32
    return %c0_i32, %c0_i32_0 : i32, i32
  }
  func.func @transform_5(%arg0: i32, %arg1: i32) -> (i32, i32) {
    %c0_i32 = arith.constant 0 : i32
    %c0_i32_0 = arith.constant 0 : i32
    %c0_i32_1 = arith.constant 0 : i32
    return %c0_i32, %c0_i32_0 : i32, i32
  }
  func.func @transform_6(%arg0: i32, %arg1: i32) -> (i32, i32) {
    %c0_i32 = arith.constant 0 : i32
    %c0_i32_0 = arith.constant 0 : i32
    return %c0_i32, %arg1 : i32, i32
  }
  func.func @transform_7(%arg0: i32, %arg1: i32) -> (i32, i32) {
    %c0_i32 = arith.constant 0 : i32
    %c0_i32_0 = arith.constant 0 : i32
    return %c0_i32, %arg1 : i32, i32
  }
  func.func @transform_8(%arg0: i32, %arg1: i32) -> (i32, i32) {
    %c0_i32 = arith.constant 0 : i32
    %c0_i32_0 = arith.constant 0 : i32
    return %arg1, %c0_i32 : i32, i32
  }
  func.func @transform_9(%arg0: i32, %arg1: i32) -> (i32, i32) {
    %c0_i32 = arith.constant 0 : i32
    %c0_i32_0 = arith.constant 0 : i32
    return %arg0, %c0_i32 : i32, i32
  }
  func.func @transform_10(%arg0: i32, %arg1: i32) -> (i32, i32) {
    %c0_i32 = arith.constant 0 : i32
    %c0_i32_0 = arith.constant 0 : i32
    return %arg0, %c0_i32 : i32, i32
  }
  func.func @transform_11(%arg0: i32, %arg1: i32) -> (i32, i32) {
    %c0_i32 = arith.constant 0 : i32
    %c0_i32_0 = arith.constant 0 : i32
    return %arg0, %c0_i32 : i32, i32
  }
  func.func @transform_12(%arg0: i32, %arg1: i32) -> (i32, i32) {
    %c0_i32 = arith.constant 0 : i32
    %c0_i32_0 = arith.constant 0 : i32
    return %arg0, %c0_i32 : i32, i32
  }
}

</mosaic_0001>

<llo_original>
// kernel: modified_image_controller_forward.1
$region0: #{modified_image_controller_forward.1}
  #allocation0 [shape = 'u32[]', space=smem, size = 0x4, offset = 0x4, fixed_abs, tag = 'smem constant byte address 0x4 - core index']
  #allocation1 [shape = 'u32[144,128]{1,0:T(1,128)}', space=vmem, size = 0x12000, scoped, tag = 'internal scratch']
  #allocation2 [shape = 'bf16[8,128]{1,0:T(8,128)(2,1)}', space=vmem, size = 0x800, scoped, tag = 'scratch operand']
  %s0 = inlined_call_operand.vmem [shape: bf16[128,128], index: 0, kind: input, shape index: {}]
  %s1 = inlined_call_operand.vmem [shape: bf16[128,256], index: 1, kind: input, shape index: {}]
  %s2 = inlined_call_operand.vmem [shape: f32[1,256], index: 2, kind: input, shape index: {}]
  %s3 = inlined_call_operand.vmem [shape: bf16[256,256], index: 3, kind: input, shape index: {}]
  %s4 = inlined_call_operand.vmem [shape: f32[1,256], index: 4, kind: input, shape index: {}]
  %s5 = inlined_call_operand.vmem [shape: f32[1,128], index: 5, kind: input, shape index: {}]
  %s6 = inlined_call_operand.vmem [shape: bf16[128,1024], index: 6, kind: input, shape index: {}]
  %s7 = inlined_call_operand.vmem [shape: f32[1,1024], index: 7, kind: input, shape index: {}]
  %s8 = inlined_call_operand.vmem [shape: bf16[1024,128], index: 8, kind: input, shape index: {}]
  %s9 = inlined_call_operand.vmem [shape: f32[8,128], index: 9, kind: output, shape index: {0}]
  %s10 = inlined_call_operand.hbm [shape: f32[8,128], index: 10, kind: output, shape index: {1}]
  %s11 = inlined_call_operand.vmem [shape: f32[8,128], index: 11, kind: output, shape index: {2}]
  %s12 = inlined_call_operand.vmem [shape: f32[8,128], index: 12, kind: output, shape index: {3}]
  %13 = xla_tuple %s9, %s10, %s11, %s12
  %s14 = sld [smem:[#allocation0]]
  $region74: #{modified_image_controller_forward.1} parent=0
    _
  %s16 = ssub.s32 1, %s14
  %s17 = scalar_select 0, %s16, %s14
  $region1: #{modified_image_controller_forward.1} parent=0
    #allocation3 [shape = 'u8[4096]{0}', space=vmem, size = 0x1000, scoped, tag = 'output window, operand 1, single buffered']
    #allocation4 [shape = 's32[1]{0}', space=sflag, size = 0x4, scoped, tag = 'scoped memory for modified_image_controller_forward.1']
    %18 = vsyncpa [#allocation4], 0
    // Predicated region
    $region2: #{modified_image_controller_forward.1} parent=1 // pred_check
      _
    $region3: #{modified_image_controller_forward.1} parent=1 // pred_check_branch
      %20 = sbr.rel (0) target = $region5
    $region4: #{modified_image_controller_forward.1} parent=1 // pred_region
      _
    $region5: #{modified_image_controller_forward.1} parent=1 // pred_fallthru
      _
    // Predicated region
    $region6: #{modified_image_controller_forward.1} parent=1 // pred_check
      _
    $region7: #{modified_image_controller_forward.1} parent=1 // pred_check_branch
      %22 = sbr.rel (0) target = $region9
    $region8: #{modified_image_controller_forward.1} parent=1 // pred_region
      _
    $region9: #{modified_image_controller_forward.1} parent=1 // pred_fallthru
      _
    // Predicated region
    $region10: #{modified_image_controller_forward.1} parent=1 // pred_check
      _
    $region11: #{modified_image_controller_forward.1} parent=1 // pred_check_branch
      %24 = sbr.rel (0) target = $region13
    $region12: #{modified_image_controller_forward.1} parent=1 // pred_region
      _
    $region13: #{modified_image_controller_forward.1} parent=1 // pred_fallthru
      _
    // Predicated region
    $region14: #{modified_image_controller_forward.1} parent=1 // pred_check
      _
    $region15: #{modified_image_controller_forward.1} parent=1 // pred_check_branch
      %26 = sbr.rel (0) target = $region17
    $region16: #{modified_image_controller_forward.1} parent=1 // pred_region
      _
    $region17: #{modified_image_controller_forward.1} parent=1 // pred_fallthru
      _
    // Predicated region
    $region18: #{modified_image_controller_forward.1} parent=1 // pred_check
      _
    $region19: #{modified_image_controller_forward.1} parent=1 // pred_check_branch
      %28 = sbr.rel (0) target = $region21
    $region20: #{modified_image_controller_forward.1} parent=1 // pred_region
      _
    $region21: #{modified_image_controller_forward.1} parent=1 // pred_fallthru
      _
    // Predicated region
    $region22: #{modified_image_controller_forward.1} parent=1 // pred_check
      _
    $region23: #{modified_image_controller_forward.1} parent=1 // pred_check_branch
      %30 = sbr.rel (0) target = $region25
    $region24: #{modified_image_controller_forward.1} parent=1 // pred_region
      _
    $region25: #{modified_image_controller_forward.1} parent=1 // pred_fallthru
      _
    // Predicated region
    $region26: #{modified_image_controller_forward.1} parent=1 // pred_check
      _
    $region27: #{modified_image_controller_forward.1} parent=1 // pred_check_branch
      %32 = sbr.rel (0) target = $region29
    $region28: #{modified_image_controller_forward.1} parent=1 // pred_region
      _
    $region29: #{modified_image_controller_forward.1} parent=1 // pred_fallthru
      _
    // Predicated region
    $region30: #{modified_image_controller_forward.1} parent=1 // pred_check
      _
    $region31: #{modified_image_controller_forward.1} parent=1 // pred_check_branch
      %34 = sbr.rel (0) target = $region33
    $region32: #{modified_image_controller_forward.1} parent=1 // pred_region
      _
    $region33: #{modified_image_controller_forward.1} parent=1 // pred_fallthru
      _
    // Predicated region
    $region34: #{modified_image_controller_forward.1} parent=1 // pred_check
      _
    $region35: #{modified_image_controller_forward.1} parent=1 // pred_check_branch
      %36 = sbr.rel (0) target = $region37
    $region36: #{modified_image_controller_forward.1} parent=1 // pred_region
      _
    $region37: #{modified_image_controller_forward.1} parent=1 // pred_fallthru
      _
    %p38 = scmp.eq.s32.totalorder 0, 0
    // Predicated region
    $region38: #{modified_image_controller_forward.1} parent=1 // pred_check
      %p39 = pneg %p38
    $region39: #{modified_image_controller_forward.1} parent=1 // pred_check_branch
      %41 = sbr.rel (%p39) target = $region41
    $region40: #{modified_image_controller_forward.1} parent=1 // pred_region
      %v42 = vld [vmem:[%s0] sm:$0xf]
      %v43 = vld [vmem:[%s0 + $0x4] sm:$0xf]
      %v44 = vld [vmem:[%s0 + $0x8] sm:$0xf]
      %v45 = vld [vmem:[%s0 + $0xc] sm:$0xf]
      %v46 = vld [vmem:[%s0 + $0x10] sm:$0xf]
      %v47 = vld [vmem:[%s0 + $0x14] sm:$0xf]
      %v48 = vld [vmem:[%s0 + $0x18] sm:$0xf]
      %v49 = vld [vmem:[%s0 + $0x1c] sm:$0xf]
      %v50 = vld [vmem:[%s0 + $0x20] sm:$0xf]
      %v51 = vld [vmem:[%s0 + $0x24] sm:$0xf]
      %v52 = vld [vmem:[%s0 + $0x28] sm:$0xf]
      %v53 = vld [vmem:[%s0 + $0x2c] sm:$0xf]
      %v54 = vld [vmem:[%s0 + $0x30] sm:$0xf]
      %v55 = vld [vmem:[%s0 + $0x34] sm:$0xf]
      %v56 = vld [vmem:[%s0 + $0x38] sm:$0xf]
      %v57 = vld [vmem:[%s0 + $0x3c] sm:$0xf]
      %v58 = vld [vmem:[%s1] sm:$0xff]
      %v59 = vld [vmem:[%s1 + $0x8] sm:$0xff]
      %v60 = vld [vmem:[%s1 + $0x10] sm:$0xff]
      %v61 = vld [vmem:[%s1 + $0x18] sm:$0xff]
      %v62 = vld [vmem:[%s1 + $0x20] sm:$0xff]
      %v63 = vld [vmem:[%s1 + $0x28] sm:$0xff]
      %v64 = vld [vmem:[%s1 + $0x30] sm:$0xff]
      %v65 = vld [vmem:[%s1 + $0x38] sm:$0xff]
      %v66 = vld [vmem:[%s1 + $0x40] sm:$0xff]
      %v67 = vld [vmem:[%s1 + $0x48] sm:$0xff]
      %v68 = vld [vmem:[%s1 + $0x50] sm:$0xff]
      %v69 = vld [vmem:[%s1 + $0x58] sm:$0xff]
      %v70 = vld [vmem:[%s1 + $0x60] sm:$0xff]
      %v71 = vld [vmem:[%s1 + $0x68] sm:$0xff]
      %v72 = vld [vmem:[%s1 + $0x70] sm:$0xff]
      %v73 = vld [vmem:[%s1 + $0x78] sm:$0xff]
      %v74 = vld [vmem:[%s2] sm:$0x3]
      %v76 = vlaneseq
      %v77 = vshrl.u32 %v76, 7
      %v78 = vsub.s32 0, %v77
      %v79 = vrot.slane %v74, %v78
      %v80 = vlaneseq
      %v81 = vshrl.u32 %v80, 7
      %v82 = vsub.s32 1, %v81
      %v83 = vrot.slane %v74, %v82
      %v102 = vunpack.c.l.b16 %v42
      %v103 = vunpack.c.l.b16 %v43
      %v104 = vunpack.c.l.b16 %v44
      %v105 = vunpack.c.l.b16 %v45
      %v106 = vunpack.c.l.b16 %v46
      %v107 = vunpack.c.l.b16 %v47
      %v108 = vunpack.c.l.b16 %v48
      %v109 = vunpack.c.l.b16 %v49
      %v110 = vunpack.c.l.b16 %v50
      %v111 = vunpack.c.l.b16 %v51
      %v112 = vunpack.c.l.b16 %v52
      %v113 = vunpack.c.l.b16 %v53
      %v114 = vunpack.c.l.b16 %v54
      %v115 = vunpack.c.l.b16 %v55
      %v116 = vunpack.c.l.b16 %v56
      %v117 = vunpack.c.l.b16 %v57
      %v118 = vpack.c.b16 %v103, %v102
      %v119 = vpack.c.b16 %v105, %v104
      %v120 = vpack.c.b16 %v107, %v106
      %v121 = vpack.c.b16 %v109, %v108
      %v122 = vpack.c.b16 %v111, %v110
      %v123 = vpack.c.b16 %v113, %v112
      %v124 = vpack.c.b16 %v115, %v114
      %v125 = vpack.c.b16 %v117, %v116
      %v150 = vunpack.c.l.b16 %v58
      %v151 = vunpack.c.h.b16 %v58
      %v152 = vunpack.c.l.b16 %v59
      %v153 = vunpack.c.h.b16 %v59
      %v154 = vunpack.c.l.b16 %v60
      %v155 = vunpack.c.h.b16 %v60
      %v156 = vunpack.c.l.b16 %v61
      %v157 = vunpack.c.h.b16 %v61
      %v158 = vunpack.c.l.b16 %v62
      %v159 = vunpack.c.h.b16 %v62
      %v160 = vunpack.c.l.b16 %v63
      %v161 = vunpack.c.h.b16 %v63
      %v162 = vunpack.c.l.b16 %v64
      %v163 = vunpack.c.h.b16 %v64
      %v164 = vunpack.c.l.b16 %v65
      %v165 = vunpack.c.h.b16 %v65
      %v166 = vunpack.c.l.b16 %v66
      %v167 = vunpack.c.h.b16 %v66
      %v168 = vunpack.c.l.b16 %v67
      %v169 = vunpack.c.h.b16 %v67
      %v170 = vunpack.c.l.b16 %v68
      %v171 = vunpack.c.h.b16 %v68
      %v172 = vunpack.c.l.b16 %v69
      %v173 = vunpack.c.h.b16 %v69
      %v174 = vunpack.c.l.b16 %v70
      %v175 = vunpack.c.h.b16 %v70
      %v176 = vunpack.c.l.b16 %v71
      %v177 = vunpack.c.h.b16 %v71
      %v178 = vunpack.c.l.b16 %v72
      %v179 = vunpack.c.h.b16 %v72
      %v180 = vunpack.c.l.b16 %v73
      %v181 = vunpack.c.h.b16 %v73
      %v182 = vpack.c.b16 %v152, %v150
      %v183 = vpack.c.b16 %v153, %v151
      %v184 = vpack.c.b16 %v156, %v154
      %v185 = vpack.c.b16 %v157, %v155
      %v186 = vpack.c.b16 %v160, %v158
      %v187 = vpack.c.b16 %v161, %v159
      %v188 = vpack.c.b16 %v164, %v162
      %v189 = vpack.c.b16 %v165, %v163
      %v190 = vpack.c.b16 %v168, %v166
      %v191 = vpack.c.b16 %v169, %v167
      %v192 = vpack.c.b16 %v172, %v170
      %v193 = vpack.c.b16 %v173, %v171
      %v194 = vpack.c.b16 %v176, %v174
      %v195 = vpack.c.b16 %v177, %v175
      %v196 = vpack.c.b16 %v180, %v178
      %v197 = vpack.c.b16 %v181, %v179
      %214 = vmatprep.subr.bf16.mxu0 %v197
      %215 = vmatpush1.bf16.msra.mxu0 %v196
      %216 = vmatprep.subr.bf16.mxu0 %v195
      %217 = vmatpush1.bf16.msra.mxu0 %v194
      %218 = vmatprep.subr.bf16.mxu0 %v193
      %219 = vmatpush1.bf16.msra.mxu0 %v192
      %220 = vmatprep.subr.bf16.mxu0 %v191
      %221 = vmatpush1.bf16.msra.mxu0 %v190
      %222 = vmatprep.subr.bf16.mxu0 %v189
      %223 = vmatpush1.bf16.msra.mxu0 %v188
      %224 = vmatprep.subr.bf16.mxu0 %v187
      %225 = vmatpush1.bf16.msra.mxu0 %v186
      %226 = vmatprep.subr.bf16.mxu0 %v185
      %227 = vmatpush1.bf16.msra.mxu0 %v184
      %228 = vmatprep.subr.bf16.mxu0 %v183
      %229 = vmatpush1.bf16.msra.mxu0 %v182
      %230 = vmatprep.subr.bf16.mxu0 0
      %231 = vmatpush2.bf16.msra.mxu0 0
      %232 = vmatprep.subr.bf16.mxu0 0
      %233 = vmatpush2.bf16.msra.mxu0 0
      %234 = vmatprep.subr.bf16.mxu0 0
      %235 = vmatpush2.bf16.msra.mxu0 0
      %236 = vmatprep.subr.bf16.mxu0 0
      %237 = vmatpush2.bf16.msra.mxu0 0
      %238 = vmatprep.subr.bf16.mxu0 0
      %239 = vmatpush2.bf16.msra.mxu0 0
      %240 = vmatprep.subr.bf16.mxu0 0
      %241 = vmatpush2.bf16.msra.mxu0 0
      %242 = vmatprep.subr.bf16.mxu0 0
      %243 = vmatpush2.bf16.msra.mxu0 0
      %244 = vmatprep.subr.bf16.mxu0 0
      %245 = vmatpush2.bf16.msra.mxu0 0
      %246 = vmatprep.mubr.bf16.mxu0 0
      %247 = vmatmul.mubr.bf16.gmra.mxu0 %v118
      %v248 = vpop.f32.mrf.mxu0
      %v249 = vadd.f32 %v79, %v248
      %v250 = vpop.f32.mrf.mxu0
      %v251 = vadd.f32 %v83, %v250
      %v252 = vpop.f32.mrf.mxu0
      %v253 = vadd.f32 %v79, %v252
      %v254 = vpop.f32.mrf.mxu0
      %v255 = vadd.f32 %v83, %v254
      %256 = vmatprep.mubr.bf16.mxu0 0
      %257 = vmatmul.mubr.bf16.gmra.mxu0 %v119
      %v258 = vpop.f32.mrf.mxu0
      %v259 = vadd.f32 %v79, %v258
      %v260 = vpop.f32.mrf.mxu0
      %v261 = vadd.f32 %v83, %v260
      %v262 = vpop.f32.mrf.mxu0
      %v263 = vadd.f32 %v79, %v262
      %v264 = vpop.f32.mrf.mxu0
      %v265 = vadd.f32 %v83, %v264
      %266 = vmatprep.mubr.bf16.mxu0 0
      %267 = vmatmul.mubr.bf16.gmra.mxu0 %v120
      %v268 = vpop.f32.mrf.mxu0
      %v269 = vadd.f32 %v79, %v268
      %v270 = vpop.f32.mrf.mxu0
      %v271 = vadd.f32 %v83, %v270
      %v272 = vpop.f32.mrf.mxu0
      %v273 = vadd.f32 %v79, %v272
      %v274 = vpop.f32.mrf.mxu0
      %v275 = vadd.f32 %v83, %v274
      %276 = vmatprep.mubr.bf16.mxu0 0
      %277 = vmatmul.mubr.bf16.gmra.mxu0 %v121
      %v278 = vpop.f32.mrf.mxu0
      %v279 = vadd.f32 %v79, %v278
      %v280 = vpop.f32.mrf.mxu0
      %v281 = vadd.f32 %v83, %v280
      %v282 = vpop.f32.mrf.mxu0
      %v283 = vadd.f32 %v79, %v282
      %v284 = vpop.f32.mrf.mxu0
      %v285 = vadd.f32 %v83, %v284
      %286 = vmatprep.mubr.bf16.mxu0 0
      %287 = vmatmul.mubr.bf16.gmra.mxu0 %v122
      %v288 = vpop.f32.mrf.mxu0
      %v289 = vadd.f32 %v79, %v288
      %v290 = vpop.f32.mrf.mxu0
      %v291 = vadd.f32 %v83, %v290
      %v292 = vpop.f32.mrf.mxu0
      %v293 = vadd.f32 %v79, %v292
      %v294 = vpop.f32.mrf.mxu0
      %v295 = vadd.f32 %v83, %v294
      %296 = vmatprep.mubr.bf16.mxu0 0
      %297 = vmatmul.mubr.bf16.gmra.mxu0 %v123
      %v298 = vpop.f32.mrf.mxu0
      %v299 = vadd.f32 %v79, %v298
      %v300 = vpop.f32.mrf.mxu0
      %v301 = vadd.f32 %v83, %v300
      %v302 = vpop.f32.mrf.mxu0
      %v303 = vadd.f32 %v79, %v302
      %v304 = vpop.f32.mrf.mxu0
      %v305 = vadd.f32 %v83, %v304
      %306 = vmatprep.mubr.bf16.mxu0 0
      %307 = vmatmul.mubr.bf16.gmra.mxu0 %v124
      %v308 = vpop.f32.mrf.mxu0
      %v309 = vadd.f32 %v79, %v308
      %v310 = vpop.f32.mrf.mxu0
      %v311 = vadd.f32 %v83, %v310
      %v312 = vpop.f32.mrf.mxu0
      %v313 = vadd.f32 %v79, %v312
      %v314 = vpop.f32.mrf.mxu0
      %v315 = vadd.f32 %v83, %v314
      %316 = vmatprep.mubr.bf16.mxu0 0
      %317 = vmatmul.mubr.bf16.gmra.mxu0 %v125
      %v318 = vpop.f32.mrf.mxu0
      %v319 = vadd.f32 %v79, %v318
      %v320 = vpop.f32.mrf.mxu0
      %v321 = vadd.f32 %v83, %v320
      %v322 = vpop.f32.mrf.mxu0
      %v323 = vadd.f32 %v79, %v322
      %v324 = vpop.f32.mrf.mxu0
      %v325 = vadd.f32 %v83, %v324
      %326 = vdwg.mxu0
      %v327 = vmax.f32 %v249, 0.0
      %v328 = vmax.f32 %v251, 0.0
      %v329 = vmax.f32 %v253, 0.0
      %v330 = vmax.f32 %v255, 0.0
      %v331 = vmax.f32 %v259, 0.0
      %v332 = vmax.f32 %v261, 0.0
      %v333 = vmax.f32 %v263, 0.0
      %v334 = vmax.f32 %v265, 0.0
      %v335 = vmax.f32 %v269, 0.0
      %v336 = vmax.f32 %v271, 0.0
      %v337 = vmax.f32 %v273, 0.0
      %v338 = vmax.f32 %v275, 0.0
      %v339 = vmax.f32 %v279, 0.0
      %v340 = vmax.f32 %v281, 0.0
      %v341 = vmax.f32 %v283, 0.0
      %v342 = vmax.f32 %v285, 0.0
      %v343 = vmax.f32 %v289, 0.0
      %v344 = vmax.f32 %v291, 0.0
      %v345 = vmax.f32 %v293, 0.0
      %v346 = vmax.f32 %v295, 0.0
      %v347 = vmax.f32 %v299, 0.0
      %v348 = vmax.f32 %v301, 0.0
      %v349 = vmax.f32 %v303, 0.0
      %v350 = vmax.f32 %v305, 0.0
      %v351 = vmax.f32 %v309, 0.0
      %v352 = vmax.f32 %v311, 0.0
      %v353 = vmax.f32 %v313, 0.0
      %v354 = vmax.f32 %v315, 0.0
      %v355 = vmax.f32 %v319, 0.0
      %v356 = vmax.f32 %v321, 0.0
      %v357 = vmax.f32 %v323, 0.0
      %v358 = vmax.f32 %v325, 0.0
      %v359 = vadd.f32 %v327, %v329
      %v360 = vrot.slane %v359, 4
      %v361 = vadd.f32 %v359, %v360
      %v362 = vrot.slane %v361, 2
      %v363 = vadd.f32 %v361, %v362
      %v364 = vrot.slane %v363, 1
      %v365 = vadd.f32 %v363, %v364
      %v366 = vadd.f32 %v328, %v330
      %v367 = vrot.slane %v366, 4
      %v368 = vadd.f32 %v366, %v367
      %v369 = vrot.slane %v368, 2
      %v370 = vadd.f32 %v368, %v369
      %v371 = vrot.slane %v370, 1
      %v372 = vadd.f32 %v370, %v371
      %v373 = vadd.f32 %v331, %v333
      %v374 = vrot.slane %v373, 4
      %v375 = vadd.f32 %v373, %v374
      %v376 = vrot.slane %v375, 2
      %v377 = vadd.f32 %v375, %v376
      %v378 = vrot.slane %v377, 1
      %v379 = vadd.f32 %v377, %v378
      %v380 = vadd.f32 %v332, %v334
      %v381 = vrot.slane %v380, 4
      %v382 = vadd.f32 %v380, %v381
      %v383 = vrot.slane %v382, 2
      %v384 = vadd.f32 %v382, %v383
      %v385 = vrot.slane %v384, 1
      %v386 = vadd.f32 %v384, %v385
      %v387 = vadd.f32 %v335, %v337
      %v388 = vrot.slane %v387, 4
      %v389 = vadd.f32 %v387, %v388
      %v390 = vrot.slane %v389, 2
      %v391 = vadd.f32 %v389, %v390
      %v392 = vrot.slane %v391, 1
      %v393 = vadd.f32 %v391, %v392
      %v394 = vadd.f32 %v336, %v338
      %v395 = vrot.slane %v394, 4
      %v396 = vadd.f32 %v394, %v395
      %v397 = vrot.slane %v396, 2
      %v398 = vadd.f32 %v396, %v397
      %v399 = vrot.slane %v398, 1
      %v400 = vadd.f32 %v398, %v399
      %v401 = vadd.f32 %v339, %v341
      %v402 = vrot.slane %v401, 4
      %v403 = vadd.f32 %v401, %v402
      %v404 = vrot.slane %v403, 2
      %v405 = vadd.f32 %v403, %v404
      %v406 = vrot.slane %v405, 1
      %v407 = vadd.f32 %v405, %v406
      %v408 = vadd.f32 %v340, %v342
      %v409 = vrot.slane %v408, 4
      %v410 = vadd.f32 %v408, %v409
      %v411 = vrot.slane %v410, 2
      %v412 = vadd.f32 %v410, %v411
      %v413 = vrot.slane %v412, 1
      %v414 = vadd.f32 %v412, %v413
      %v415 = vadd.f32 %v343, %v345
      %v416 = vrot.slane %v415, 4
      %v417 = vadd.f32 %v415, %v416
      %v418 = vrot.slane %v417, 2
      %v419 = vadd.f32 %v417, %v418
      %v420 = vrot.slane %v419, 1
      %v421 = vadd.f32 %v419, %v420
      %v422 = vadd.f32 %v344, %v346
      %v423 = vrot.slane %v422, 4
      %v424 = vadd.f32 %v422, %v423
      %v425 = vrot.slane %v424, 2
      %v426 = vadd.f32 %v424, %v425
      %v427 = vrot.slane %v426, 1
      %v428 = vadd.f32 %v426, %v427
      %v429 = vadd.f32 %v347, %v349
      %v430 = vrot.slane %v429, 4
      %v431 = vadd.f32 %v429, %v430
      %v432 = vrot.slane %v431, 2
      %v433 = vadd.f32 %v431, %v432
      %v434 = vrot.slane %v433, 1
      %v435 = vadd.f32 %v433, %v434
      %v436 = vadd.f32 %v348, %v350
      %v437 = vrot.slane %v436, 4
      %v438 = vadd.f32 %v436, %v437
      %v439 = vrot.slane %v438, 2
      %v440 = vadd.f32 %v438, %v439
      %v441 = vrot.slane %v440, 1
      %v442 = vadd.f32 %v440, %v441
      %v443 = vadd.f32 %v351, %v353
      %v444 = vrot.slane %v443, 4
      %v445 = vadd.f32 %v443, %v444
      %v446 = vrot.slane %v445, 2
      %v447 = vadd.f32 %v445, %v446
      %v448 = vrot.slane %v447, 1
      %v449 = vadd.f32 %v447, %v448
      %v450 = vadd.f32 %v352, %v354
      %v451 = vrot.slane %v450, 4
      %v452 = vadd.f32 %v450, %v451
      %v453 = vrot.slane %v452, 2
      %v454 = vadd.f32 %v452, %v453
      %v455 = vrot.slane %v454, 1
      %v456 = vadd.f32 %v454, %v455
      %v457 = vadd.f32 %v355, %v357
      %v458 = vrot.slane %v457, 4
      %v459 = vadd.f32 %v457, %v458
      %v460 = vrot.slane %v459, 2
      %v461 = vadd.f32 %v459, %v460
      %v462 = vrot.slane %v461, 1
      %v463 = vadd.f32 %v461, %v462
      %v464 = vadd.f32 %v356, %v358
      %v465 = vrot.slane %v464, 4
      %v466 = vadd.f32 %v464, %v465
      %v467 = vrot.slane %v466, 2
      %v468 = vadd.f32 %v466, %v467
      %v469 = vrot.slane %v468, 1
      %v470 = vadd.f32 %v468, %v469
      %v471 = vmul.f32 %v365, 0.0625
      %v472 = vmul.f32 %v372, 0.0625
      %v473 = vmul.f32 %v379, 0.0625
      %v474 = vmul.f32 %v386, 0.0625
      %v475 = vmul.f32 %v393, 0.0625
      %v476 = vmul.f32 %v400, 0.0625
      %v477 = vmul.f32 %v407, 0.0625
      %v478 = vmul.f32 %v414, 0.0625
      %v479 = vmul.f32 %v421, 0.0625
      %v480 = vmul.f32 %v428, 0.0625
      %v481 = vmul.f32 %v435, 0.0625
      %v482 = vmul.f32 %v442, 0.0625
      %v483 = vmul.f32 %v449, 0.0625
      %v484 = vmul.f32 %v456, 0.0625
      %v485 = vmul.f32 %v463, 0.0625
      %v486 = vmul.f32 %v470, 0.0625
      %v487 = vpack.c.bf16 %v471, %v471
      %v488 = vpack.c.bf16 %v472, %v472
      %v489 = vpack.c.bf16 %v473, %v473
      %v490 = vpack.c.bf16 %v474, %v474
      %v491 = vpack.c.bf16 %v475, %v475
      %v492 = vpack.c.bf16 %v476, %v476
      %v493 = vpack.c.bf16 %v477, %v477
      %v494 = vpack.c.bf16 %v478, %v478
      %v495 = vpack.c.bf16 %v479, %v479
      %v496 = vpack.c.bf16 %v480, %v480
      %v497 = vpack.c.bf16 %v481, %v481
      %v498 = vpack.c.bf16 %v482, %v482
      %v499 = vpack.c.bf16 %v483, %v483
      %v500 = vpack.c.bf16 %v484, %v484
      %v501 = vpack.c.bf16 %v485, %v485
      %v502 = vpack.c.bf16 %v486, %v486
      %v503 = vld [vmem:[%s3] sm:$0xff]
      %v504 = vld [vmem:[%s3 + $0x8] sm:$0xff]
      %v505 = vld [vmem:[%s3 + $0x10] sm:$0xff]
      %v506 = vld [vmem:[%s3 + $0x18] sm:$0xff]
      %v507 = vld [vmem:[%s3 + $0x20] sm:$0xff]
      %v508 = vld [vmem:[%s3 + $0x28] sm:$0xff]
      %v509 = vld [vmem:[%s3 + $0x30] sm:$0xff]
      %v510 = vld [vmem:[%s3 + $0x38] sm:$0xff]
      %v511 = vld [vmem:[%s3 + $0x40] sm:$0xff]
      %v512 = vld [vmem:[%s3 + $0x48] sm:$0xff]
      %v513 = vld [vmem:[%s3 + $0x50] sm:$0xff]
      %v514 = vld [vmem:[%s3 + $0x58] sm:$0xff]
      %v515 = vld [vmem:[%s3 + $0x60] sm:$0xff]
      %v516 = vld [vmem:[%s3 + $0x68] sm:$0xff]
      %v517 = vld [vmem:[%s3 + $0x70] sm:$0xff]
      %v518 = vld [vmem:[%s3 + $0x78] sm:$0xff]
      %v519 = vld [vmem:[%s3 + $0x80] sm:$0xff]
      %v520 = vld [vmem:[%s3 + $0x88] sm:$0xff]
      %v521 = vld [vmem:[%s3 + $0x90] sm:$0xff]
      %v522 = vld [vmem:[%s3 + $0x98] sm:$0xff]
      %v523 = vld [vmem:[%s3 + $0xa0] sm:$0xff]
      %v524 = vld [vmem:[%s3 + $0xa8] sm:$0xff]
      %v525 = vld [vmem:[%s3 + $0xb0] sm:$0xff]
      %v526 = vld [vmem:[%s3 + $0xb8] sm:$0xff]
      %v527 = vld [vmem:[%s3 + $0xc0] sm:$0xff]
      %v528 = vld [vmem:[%s3 + $0xc8] sm:$0xff]
      %v529 = vld [vmem:[%s3 + $0xd0] sm:$0xff]
      %v530 = vld [vmem:[%s3 + $0xd8] sm:$0xff]
      %v531 = vld [vmem:[%s3 + $0xe0] sm:$0xff]
      %v532 = vld [vmem:[%s3 + $0xe8] sm:$0xff]
      %v533 = vld [vmem:[%s3 + $0xf0] sm:$0xff]
      %v534 = vld [vmem:[%s3 + $0xf8] sm:$0xff]
      %v535 = vld [vmem:[%s4] sm:$0x3]
      %v537 = vlaneseq
      %v538 = vshrl.u32 %v537, 7
      %v539 = vsub.s32 0, %v538
      %v540 = vrot.slane %v535, %v539
      %v541 = vlaneseq
      %v542 = vshrl.u32 %v541, 7
      %v543 = vsub.s32 1, %v542
      %v544 = vrot.slane %v535, %v543
      %v563 = vunpack.c.l.b16 %v487
      %v564 = vunpack.c.l.b16 %v488
      %v565 = vunpack.c.l.b16 %v489
      %v566 = vunpack.c.l.b16 %v490
      %v567 = vunpack.c.l.b16 %v491
      %v568 = vunpack.c.l.b16 %v492
      %v569 = vunpack.c.l.b16 %v493
      %v570 = vunpack.c.l.b16 %v494
      %v571 = vunpack.c.l.b16 %v495
      %v572 = vunpack.c.l.b16 %v496
      %v573 = vunpack.c.l.b16 %v497
      %v574 = vunpack.c.l.b16 %v498
      %v575 = vunpack.c.l.b16 %v499
      %v576 = vunpack.c.l.b16 %v500
      %v577 = vunpack.c.l.b16 %v501
      %v578 = vunpack.c.l.b16 %v502
      %vm579 = vcmask 1041409
      %v580 = vsel %vm579, %v565, %v563
      %vm581 = vcmask 1042434
      %v582 = vsel %vm581, %v567, %v580
      %vm583 = vcmask 1043459
      %v584 = vsel %vm583, %v569, %v582
      %vm585 = vcmask 1044484
      %v586 = vsel %vm585, %v571, %v584
      %vm587 = vcmask 1045509
      %v588 = vsel %vm587, %v573, %v586
      %vm589 = vcmask 1046534
      %v590 = vsel %vm589, %v575, %v588
      %vm591 = vcmask 1047559
      %v592 = vsel %vm591, %v577, %v590
      %v593 = vsel %vm579, %v566, %v564
      %v594 = vsel %vm581, %v568, %v593
      %v595 = vsel %vm583, %v570, %v594
      %v596 = vsel %vm585, %v572, %v595
      %v597 = vsel %vm587, %v574, %v596
      %v598 = vsel %vm589, %v576, %v597
      %v599 = vsel %vm591, %v578, %v598
      %v600 = vpack.c.b16 %v592, %v592
      %v601 = vpack.c.b16 %v599, %v599
      %v636 = vunpack.c.l.b16 %v503
      %v637 = vunpack.c.h.b16 %v503
      %v638 = vunpack.c.l.b16 %v504
      %v639 = vunpack.c.h.b16 %v504
      %v640 = vunpack.c.l.b16 %v505
      %v641 = vunpack.c.h.b16 %v505
      %v642 = vunpack.c.l.b16 %v506
      %v643 = vunpack.c.h.b16 %v506
      %v644 = vunpack.c.l.b16 %v507
      %v645 = vunpack.c.h.b16 %v507
      %v646 = vunpack.c.l.b16 %v508
      %v647 = vunpack.c.h.b16 %v508
      %v648 = vunpack.c.l.b16 %v509
      %v649 = vunpack.c.h.b16 %v509
      %v650 = vunpack.c.l.b16 %v510
      %v651 = vunpack.c.h.b16 %v510
      %v652 = vunpack.c.l.b16 %v511
      %v653 = vunpack.c.h.b16 %v511
      %v654 = vunpack.c.l.b16 %v512
      %v655 = vunpack.c.h.b16 %v512
      %v656 = vunpack.c.l.b16 %v513
      %v657 = vunpack.c.h.b16 %v513
      %v658 = vunpack.c.l.b16 %v514
      %v659 = vunpack.c.h.b16 %v514
      %v660 = vunpack.c.l.b16 %v515
      %v661 = vunpack.c.h.b16 %v515
      %v662 = vunpack.c.l.b16 %v516
      %v663 = vunpack.c.h.b16 %v516
      %v664 = vunpack.c.l.b16 %v517
      %v665 = vunpack.c.h.b16 %v517
      %v666 = vunpack.c.l.b16 %v518
      %v667 = vunpack.c.h.b16 %v518
      %v668 = vunpack.c.l.b16 %v519
      %v669 = vunpack.c.h.b16 %v519
      %v670 = vunpack.c.l.b16 %v520
      %v671 = vunpack.c.h.b16 %v520
      %v672 = vunpack.c.l.b16 %v521
      %v673 = vunpack.c.h.b16 %v521
      %v674 = vunpack.c.l.b16 %v522
      %v675 = vunpack.c.h.b16 %v522
      %v676 = vunpack.c.l.b16 %v523
      %v677 = vunpack.c.h.b16 %v523
      %v678 = vunpack.c.l.b16 %v524
      %v679 = vunpack.c.h.b16 %v524
      %v680 = vunpack.c.l.b16 %v525
      %v681 = vunpack.c.h.b16 %v525
      %v682 = vunpack.c.l.b16 %v526
      %v683 = vunpack.c.h.b16 %v526
      %v684 = vunpack.c.l.b16 %v527
      %v685 = vunpack.c.h.b16 %v527
      %v686 = vunpack.c.l.b16 %v528
      %v687 = vunpack.c.h.b16 %v528
      %v688 = vunpack.c.l.b16 %v529
      %v689 = vunpack.c.h.b16 %v529
      %v690 = vunpack.c.l.b16 %v530
      %v691 = vunpack.c.h.b16 %v530
      %v692 = vunpack.c.l.b16 %v531
      %v693 = vunpack.c.h.b16 %v531
      %v694 = vunpack.c.l.b16 %v532
      %v695 = vunpack.c.h.b16 %v532
      %v696 = vunpack.c.l.b16 %v533
      %v697 = vunpack.c.h.b16 %v533
      %v698 = vunpack.c.l.b16 %v534
      %v699 = vunpack.c.h.b16 %v534
      %v700 = vpack.c.b16 %v638, %v636
      %v701 = vpack.c.b16 %v639, %v637
      %v702 = vpack.c.b16 %v642, %v640
      %v703 = vpack.c.b16 %v643, %v641
      %v704 = vpack.c.b16 %v646, %v644
      %v705 = vpack.c.b16 %v647, %v645
      %v706 = vpack.c.b16 %v650, %v648
      %v707 = vpack.c.b16 %v651, %v649
      %v708 = vpack.c.b16 %v654, %v652
      %v709 = vpack.c.b16 %v655, %v653
      %v710 = vpack.c.b16 %v658, %v656
      %v711 = vpack.c.b16 %v659, %v657
      %v712 = vpack.c.b16 %v662, %v660
      %v713 = vpack.c.b16 %v663, %v661
      %v714 = vpack.c.b16 %v666, %v664
      %v715 = vpack.c.b16 %v667, %v665
      %v716 = vpack.c.b16 %v670, %v668
      %v717 = vpack.c.b16 %v671, %v669
      %v718 = vpack.c.b16 %v674, %v672
      %v719 = vpack.c.b16 %v675, %v673
      %v720 = vpack.c.b16 %v678, %v676
      %v721 = vpack.c.b16 %v679, %v677
      %v722 = vpack.c.b16 %v682, %v680
      %v723 = vpack.c.b16 %v683, %v681
      %v724 = vpack.c.b16 %v686, %v684
      %v725 = vpack.c.b16 %v687, %v685
      %v726 = vpack.c.b16 %v690, %v688
      %v727 = vpack.c.b16 %v691, %v689
      %v728 = vpack.c.b16 %v694, %v692
      %v729 = vpack.c.b16 %v695, %v693
      %v730 = vpack.c.b16 %v698, %v696
      %v731 = vpack.c.b16 %v699, %v697
      %764 = vmatprep.subr.bf16.mxu0 %v715
      %765 = vmatpush1.bf16.msra.mxu0 %v714
      %766 = vmatprep.subr.bf16.mxu0 %v713
      %767 = vmatpush1.bf16.msra.mxu0 %v712
      %768 = vmatprep.subr.bf16.mxu0 %v711
      %769 = vmatpush1.bf16.msra.mxu0 %v710
      %770 = vmatprep.subr.bf16.mxu0 %v709
      %771 = vmatpush1.bf16.msra.mxu0 %v708
      %772 = vmatprep.subr.bf16.mxu0 %v707
      %773 = vmatpush1.bf16.msra.mxu0 %v706
      %774 = vmatprep.subr.bf16.mxu0 %v705
      %775 = vmatpush1.bf16.msra.mxu0 %v704
      %776 = vmatprep.subr.bf16.mxu0 %v703
      %777 = vmatpush1.bf16.msra.mxu0 %v702
      %778 = vmatprep.subr.bf16.mxu0 %v701
      %779 = vmatpush1.bf16.msra.mxu0 %v700
      %780 = vmatprep.subr.bf16.mxu0 %v731
      %781 = vmatpush2.bf16.msra.mxu0 %v730
      %782 = vmatprep.subr.bf16.mxu0 %v729
      %783 = vmatpush2.bf16.msra.mxu0 %v728
      %784 = vmatprep.subr.bf16.mxu0 %v727
      %785 = vmatpush2.bf16.msra.mxu0 %v726
      %786 = vmatprep.subr.bf16.mxu0 %v725
      %787 = vmatpush2.bf16.msra.mxu0 %v724
      %788 = vmatprep.subr.bf16.mxu0 %v723
      %789 = vmatpush2.bf16.msra.mxu0 %v722
      %790 = vmatprep.subr.bf16.mxu0 %v721
      %791 = vmatpush2.bf16.msra.mxu0 %v720
      %792 = vmatprep.subr.bf16.mxu0 %v719
      %793 = vmatpush2.bf16.msra.mxu0 %v718
      %794 = vmatprep.subr.bf16.mxu0 %v717
      %795 = vmatpush2.bf16.msra.mxu0 %v716
      %796 = vmatprep.mubr.bf16.mxu0 %v601
      %797 = vmatmul.mubr.bf16.gmra.mxu0 %v600
      %v798 = vpop.f32.mrf.mxu0
      %v799 = vadd.f32 %v540, %v798
      %v800 = vpop.f32.mrf.mxu0
      %v801 = vadd.f32 %v544, %v800
      %v802 = vpop.f32.mrf.mxu0
      %v803 = vpop.f32.mrf.mxu0
      %804 = vdwg.mxu0
      %805 = vst [vmem:[%s9] sm:$0xff] %v799
      %806 = vst [vmem:[#allocation3] sm:$0xff] %v801
      %v807 = vld [vmem:[%s5] sm:$0x1]
      %v809 = vlaneseq
      %v810 = vshrl.u32 %v809, 7
      %v811 = vsub.s32 0, %v810
      %v812 = vrot.slane %v807, %v811
      %v814 = vsub.f32 %v801, %v812
      %v815 = vpack.c.bf16 %v814, %v814
      %816 = vst [vmem:[#allocation2] sm:$0xf] %v815
      %v817 = vld [vmem:[%s5] sm:$0x1]
      %v819 = vlaneseq
      %v820 = vshrl.u32 %v819, 7
      %v821 = vsub.s32 0, %v820
      %v822 = vrot.slane %v817, %v821
      %v824 = vadd.f32 %v822, 0.0
      %825 = vst [vmem:[%s11] sm:$0xff] %v824
      %826 = vst [vmem:[%s12] sm:$0xff] 0.0
    $region41: #{modified_image_controller_forward.1} parent=1 // pred_fallthru
      _
    %v827 = vld [vmem:[#allocation2] sm:$0xf]
    %v828 = vld [vmem:[%s6] sm:$0xff]
    %v829 = vld [vmem:[%s6 + $0x8] sm:$0xff]
    %v830 = vld [vmem:[%s6 + $0x10] sm:$0xff]
    %v831 = vld [vmem:[%s6 + $0x18] sm:$0xff]
    %v832 = vld [vmem:[%s6 + $0x20] sm:$0xff]
    %v833 = vld [vmem:[%s6 + $0x28] sm:$0xff]
    %v834 = vld [vmem:[%s6 + $0x30] sm:$0xff]
    %v835 = vld [vmem:[%s6 + $0x38] sm:$0xff]
    %v836 = vld [vmem:[%s6 + $0x40] sm:$0xff]
    %v837 = vld [vmem:[%s6 + $0x48] sm:$0xff]
    %v838 = vld [vmem:[%s6 + $0x50] sm:$0xff]
    %v839 = vld [vmem:[%s6 + $0x58] sm:$0xff]
    %v840 = vld [vmem:[%s6 + $0x60] sm:$0xff]
    %v841 = vld [vmem:[%s6 + $0x68] sm:$0xff]
    %v842 = vld [vmem:[%s6 + $0x70] sm:$0xff]
    %v843 = vld [vmem:[%s6 + $0x78] sm:$0xff]
    %v844 = vld [vmem:[%s6 + $0x80] sm:$0xff]
    %v845 = vld [vmem:[%s6 + $0x88] sm:$0xff]
    %v846 = vld [vmem:[%s6 + $0x90] sm:$0xff]
    %v847 = vld [vmem:[%s6 + $0x98] sm:$0xff]
    %v848 = vld [vmem:[%s6 + $0xa0] sm:$0xff]
    %v849 = vld [vmem:[%s6 + $0xa8] sm:$0xff]
    %v850 = vld [vmem:[%s6 + $0xb0] sm:$0xff]
    %v851 = vld [vmem:[%s6 + $0xb8] sm:$0xff]
    %v852 = vld [vmem:[%s6 + $0xc0] sm:$0xff]
    %v853 = vld [vmem:[%s6 + $0xc8] sm:$0xff]
    %v854 = vld [vmem:[%s6 + $0xd0] sm:$0xff]
    %v855 = vld [vmem:[%s6 + $0xd8] sm:$0xff]
    %v856 = vld [vmem:[%s6 + $0xe0] sm:$0xff]
    %v857 = vld [vmem:[%s6 + $0xe8] sm:$0xff]
    %v858 = vld [vmem:[%s6 + $0xf0] sm:$0xff]
    %v859 = vld [vmem:[%s6 + $0xf8] sm:$0xff]
    %v860 = vld [vmem:[%s6 + $0x100] sm:$0xff]
    %v861 = vld [vmem:[%s6 + $0x108] sm:$0xff]
    %v862 = vld [vmem:[%s6 + $0x110] sm:$0xff]
    %v863 = vld [vmem:[%s6 + $0x118] sm:$0xff]
    %v864 = vld [vmem:[%s6 + $0x120] sm:$0xff]
    %v865 = vld [vmem:[%s6 + $0x128] sm:$0xff]
    %v866 = vld [vmem:[%s6 + $0x130] sm:$0xff]
    %v867 = vld [vmem:[%s6 + $0x138] sm:$0xff]
    %v868 = vld [vmem:[%s6 + $0x140] sm:$0xff]
    %v869 = vld [vmem:[%s6 + $0x148] sm:$0xff]
    %v870 = vld [vmem:[%s6 + $0x150] sm:$0xff]
    %v871 = vld [vmem:[%s6 + $0x158] sm:$0xff]
    %v872 = vld [vmem:[%s6 + $0x160] sm:$0xff]
    %v873 = vld [vmem:[%s6 + $0x168] sm:$0xff]
    %v874 = vld [vmem:[%s6 + $0x170] sm:$0xff]
    %v875 = vld [vmem:[%s6 + $0x178] sm:$0xff]
    %v876 = vld [vmem:[%s6 + $0x180] sm:$0xff]
    %v877 = vld [vmem:[%s6 + $0x188] sm:$0xff]
    %v878 = vld [vmem:[%s6 + $0x190] sm:$0xff]
    %v879 = vld [vmem:[%s6 + $0x198] sm:$0xff]
    %v880 = vld [vmem:[%s6 + $0x1a0] sm:$0xff]
    %v881 = vld [vmem:[%s6 + $0x1a8] sm:$0xff]
    %v882 = vld [vmem:[%s6 + $0x1b0] sm:$0xff]
    %v883 = vld [vmem:[%s6 + $0x1b8] sm:$0xff]
    %v884 = vld [vmem:[%s6 + $0x1c0] sm:$0xff]
    %v885 = vld [vmem:[%s6 + $0x1c8] sm:$0xff]
    %v886 = vld [vmem:[%s6 + $0x1d0] sm:$0xff]
    %v887 = vld [vmem:[%s6 + $0x1d8] sm:$0xff]
    %v888 = vld [vmem:[%s6 + $0x1e0] sm:$0xff]
    %v889 = vld [vmem:[%s6 + $0x1e8] sm:$0xff]
    %v890 = vld [vmem:[%s6 + $0x1f0] sm:$0xff]
    %v891 = vld [vmem:[%s6 + $0x1f8] sm:$0xff]
    %v892 = vld [vmem:[%s7] sm:$0xff]
    %v894 = vlaneseq
    %v895 = vshrl.u32 %v894, 7
    %v896 = vsub.s32 0, %v895
    %v897 = vrot.slane %v892, %v896
    %v898 = vlaneseq
    %v899 = vshrl.u32 %v898, 7
    %v900 = vsub.s32 1, %v899
    %v901 = vrot.slane %v892, %v900
    %v902 = vlaneseq
    %v903 = vshrl.u32 %v902, 7
    %v904 = vsub.s32 2, %v903
    %v905 = vrot.slane %v892, %v904
    %v906 = vlaneseq
    %v907 = vshrl.u32 %v906, 7
    %v908 = vsub.s32 3, %v907
    %v909 = vrot.slane %v892, %v908
    %v910 = vlaneseq
    %v911 = vshrl.u32 %v910, 7
    %v912 = vsub.s32 4, %v911
    %v913 = vrot.slane %v892, %v912
    %v914 = vlaneseq
    %v915 = vshrl.u32 %v914, 7
    %v916 = vsub.s32 5, %v915
    %v917 = vrot.slane %v892, %v916
    %v918 = vlaneseq
    %v919 = vshrl.u32 %v918, 7
    %v920 = vsub.s32 6, %v919
    %v921 = vrot.slane %v892, %v920
    %v922 = vlaneseq
    %v923 = vshrl.u32 %v922, 7
    %v924 = vsub.s32 7, %v923
    %v925 = vrot.slane %v892, %v924
    %v998 = vunpack.c.l.b16 %v828
    %v999 = vunpack.c.h.b16 %v828
    %v1000 = vunpack.c.l.b16 %v829
    %v1001 = vunpack.c.h.b16 %v829
    %v1002 = vunpack.c.l.b16 %v830
    %v1003 = vunpack.c.h.b16 %v830
    %v1004 = vunpack.c.l.b16 %v831
    %v1005 = vunpack.c.h.b16 %v831
    %v1006 = vunpack.c.l.b16 %v832
    %v1007 = vunpack.c.h.b16 %v832
    %v1008 = vunpack.c.l.b16 %v833
    %v1009 = vunpack.c.h.b16 %v833
    %v1010 = vunpack.c.l.b16 %v834
    %v1011 = vunpack.c.h.b16 %v834
    %v1012 = vunpack.c.l.b16 %v835
    %v1013 = vunpack.c.h.b16 %v835
    %v1014 = vunpack.c.l.b16 %v836
    %v1015 = vunpack.c.h.b16 %v836
    %v1016 = vunpack.c.l.b16 %v837
    %v1017 = vunpack.c.h.b16 %v837
    %v1018 = vunpack.c.l.b16 %v838
    %v1019 = vunpack.c.h.b16 %v838
    %v1020 = vunpack.c.l.b16 %v839
    %v1021 = vunpack.c.h.b16 %v839
    %v1022 = vunpack.c.l.b16 %v840
    %v1023 = vunpack.c.h.b16 %v840
    %v1024 = vunpack.c.l.b16 %v841
    %v1025 = vunpack.c.h.b16 %v841
    %v1026 = vunpack.c.l.b16 %v842
    %v1027 = vunpack.c.h.b16 %v842
    %v1028 = vunpack.c.l.b16 %v843
    %v1029 = vunpack.c.h.b16 %v843
    %v1030 = vunpack.c.l.b16 %v844
    %v1031 = vunpack.c.h.b16 %v844
    %v1032 = vunpack.c.l.b16 %v845
    %v1033 = vunpack.c.h.b16 %v845
    %v1034 = vunpack.c.l.b16 %v846
    %v1035 = vunpack.c.h.b16 %v846
    %v1036 = vunpack.c.l.b16 %v847
    %v1037 = vunpack.c.h.b16 %v847
    %v1038 = vunpack.c.l.b16 %v848
    %v1039 = vunpack.c.h.b16 %v848
    %v1040 = vunpack.c.l.b16 %v849
    %v1041 = vunpack.c.h.b16 %v849
    %v1042 = vunpack.c.l.b16 %v850
    %v1043 = vunpack.c.h.b16 %v850
    %v1044 = vunpack.c.l.b16 %v851
    %v1045 = vunpack.c.h.b16 %v851
    %v1046 = vunpack.c.l.b16 %v852
    %v1047 = vunpack.c.h.b16 %v852
    %v1048 = vunpack.c.l.b16 %v853
    %v1049 = vunpack.c.h.b16 %v853
    %v1050 = vunpack.c.l.b16 %v854
    %v1051 = vunpack.c.h.b16 %v854
    %v1052 = vunpack.c.l.b16 %v855
    %v1053 = vunpack.c.h.b16 %v855
    %v1054 = vunpack.c.l.b16 %v856
    %v1055 = vunpack.c.h.b16 %v856
    %v1056 = vunpack.c.l.b16 %v857
    %v1057 = vunpack.c.h.b16 %v857
    %v1058 = vunpack.c.l.b16 %v858
    %v1059 = vunpack.c.h.b16 %v858
    %v1060 = vunpack.c.l.b16 %v859
    %v1061 = vunpack.c.h.b16 %v859
    %v1062 = vunpack.c.l.b16 %v860
    %v1063 = vunpack.c.h.b16 %v860
    %v1064 = vunpack.c.l.b16 %v861
    %v1065 = vunpack.c.h.b16 %v861
    %v1066 = vunpack.c.l.b16 %v862
    %v1067 = vunpack.c.h.b16 %v862
    %v1068 = vunpack.c.l.b16 %v863
    %v1069 = vunpack.c.h.b16 %v863
    %v1070 = vunpack.c.l.b16 %v864
    %v1071 = vunpack.c.h.b16 %v864
    %v1072 = vunpack.c.l.b16 %v865
    %v1073 = vunpack.c.h.b16 %v865
    %v1074 = vunpack.c.l.b16 %v866
    %v1075 = vunpack.c.h.b16 %v866
    %v1076 = vunpack.c.l.b16 %v867
    %v1077 = vunpack.c.h.b16 %v867
    %v1078 = vunpack.c.l.b16 %v868
    %v1079 = vunpack.c.h.b16 %v868
    %v1080 = vunpack.c.l.b16 %v869
    %v1081 = vunpack.c.h.b16 %v869
    %v1082 = vunpack.c.l.b16 %v870
    %v1083 = vunpack.c.h.b16 %v870
    %v1084 = vunpack.c.l.b16 %v871
    %v1085 = vunpack.c.h.b16 %v871
    %v1086 = vunpack.c.l.b16 %v872
    %v1087 = vunpack.c.h.b16 %v872
    %v1088 = vunpack.c.l.b16 %v873
    %v1089 = vunpack.c.h.b16 %v873
    %v1090 = vunpack.c.l.b16 %v874
    %v1091 = vunpack.c.h.b16 %v874
    %v1092 = vunpack.c.l.b16 %v875
    %v1093 = vunpack.c.h.b16 %v875
    %v1094 = vunpack.c.l.b16 %v876
    %v1095 = vunpack.c.h.b16 %v876
    %v1096 = vunpack.c.l.b16 %v877
    %v1097 = vunpack.c.h.b16 %v877
    %v1098 = vunpack.c.l.b16 %v878
    %v1099 = vunpack.c.h.b16 %v878
    %v1100 = vunpack.c.l.b16 %v879
    %v1101 = vunpack.c.h.b16 %v879
    %v1102 = vunpack.c.l.b16 %v880
    %v1103 = vunpack.c.h.b16 %v880
    %v1104 = vunpack.c.l.b16 %v881
    %v1105 = vunpack.c.h.b16 %v881
    %v1106 = vunpack.c.l.b16 %v882
    %v1107 = vunpack.c.h.b16 %v882
    %v1108 = vunpack.c.l.b16 %v883
    %v1109 = vunpack.c.h.b16 %v883
    %v1110 = vunpack.c.l.b16 %v884
    %v1111 = vunpack.c.h.b16 %v884
    %v1112 = vunpack.c.l.b16 %v885
    %v1113 = vunpack.c.h.b16 %v885
    %v1114 = vunpack.c.l.b16 %v886
    %v1115 = vunpack.c.h.b16 %v886
    %v1116 = vunpack.c.l.b16 %v887
    %v1117 = vunpack.c.h.b16 %v887
    %v1118 = vunpack.c.l.b16 %v888
    %v1119 = vunpack.c.h.b16 %v888
    %v1120 = vunpack.c.l.b16 %v889
    %v1121 = vunpack.c.h.b16 %v889
    %v1122 = vunpack.c.l.b16 %v890
    %v1123 = vunpack.c.h.b16 %v890
    %v1124 = vunpack.c.l.b16 %v891
    %v1125 = vunpack.c.h.b16 %v891
    %v1126 = vpack.c.b16 %v1006, %v998
    %v1127 = vpack.c.b16 %v1007, %v999
    %v1128 = vpack.c.b16 %v1008, %v1000
    %v1129 = vpack.c.b16 %v1009, %v1001
    %v1130 = vpack.c.b16 %v1010, %v1002
    %v1131 = vpack.c.b16 %v1011, %v1003
    %v1132 = vpack.c.b16 %v1012, %v1004
    %v1133 = vpack.c.b16 %v1013, %v1005
    %v1134 = vpack.c.b16 %v1022, %v1014
    %v1135 = vpack.c.b16 %v1023, %v1015
    %v1136 = vpack.c.b16 %v1024, %v1016
    %v1137 = vpack.c.b16 %v1025, %v1017
    %v1138 = vpack.c.b16 %v1026, %v1018
    %v1139 = vpack.c.b16 %v1027, %v1019
    %v1140 = vpack.c.b16 %v1028, %v1020
    %v1141 = vpack.c.b16 %v1029, %v1021
    %v1142 = vpack.c.b16 %v1038, %v1030
    %v1143 = vpack.c.b16 %v1039, %v1031
    %v1144 = vpack.c.b16 %v1040, %v1032
    %v1145 = vpack.c.b16 %v1041, %v1033
    %v1146 = vpack.c.b16 %v1042, %v1034
    %v1147 = vpack.c.b16 %v1043, %v1035
    %v1148 = vpack.c.b16 %v1044, %v1036
    %v1149 = vpack.c.b16 %v1045, %v1037
    %v1150 = vpack.c.b16 %v1054, %v1046
    %v1151 = vpack.c.b16 %v1055, %v1047
    %v1152 = vpack.c.b16 %v1056, %v1048
    %v1153 = vpack.c.b16 %v1057, %v1049
    %v1154 = vpack.c.b16 %v1058, %v1050
    %v1155 = vpack.c.b16 %v1059, %v1051
    %v1156 = vpack.c.b16 %v1060, %v1052
    %v1157 = vpack.c.b16 %v1061, %v1053
    %v1158 = vpack.c.b16 %v1070, %v1062
    %v1159 = vpack.c.b16 %v1071, %v1063
    %v1160 = vpack.c.b16 %v1072, %v1064
    %v1161 = vpack.c.b16 %v1073, %v1065
    %v1162 = vpack.c.b16 %v1074, %v1066
    %v1163 = vpack.c.b16 %v1075, %v1067
    %v1164 = vpack.c.b16 %v1076, %v1068
    %v1165 = vpack.c.b16 %v1077, %v1069
    %v1166 = vpack.c.b16 %v1086, %v1078
    %v1167 = vpack.c.b16 %v1087, %v1079
    %v1168 = vpack.c.b16 %v1088, %v1080
    %v1169 = vpack.c.b16 %v1089, %v1081
    %v1170 = vpack.c.b16 %v1090, %v1082
    %v1171 = vpack.c.b16 %v1091, %v1083
    %v1172 = vpack.c.b16 %v1092, %v1084
    %v1173 = vpack.c.b16 %v1093, %v1085
    %v1174 = vpack.c.b16 %v1102, %v1094
    %v1175 = vpack.c.b16 %v1103, %v1095
    %v1176 = vpack.c.b16 %v1104, %v1096
    %v1177 = vpack.c.b16 %v1105, %v1097
    %v1178 = vpack.c.b16 %v1106, %v1098
    %v1179 = vpack.c.b16 %v1107, %v1099
    %v1180 = vpack.c.b16 %v1108, %v1100
    %v1181 = vpack.c.b16 %v1109, %v1101
    %v1182 = vpack.c.b16 %v1118, %v1110
    %v1183 = vpack.c.b16 %v1119, %v1111
    %v1184 = vpack.c.b16 %v1120, %v1112
    %v1185 = vpack.c.b16 %v1121, %v1113
    %v1186 = vpack.c.b16 %v1122, %v1114
    %v1187 = vpack.c.b16 %v1123, %v1115
    %v1188 = vpack.c.b16 %v1124, %v1116
    %v1189 = vpack.c.b16 %v1125, %v1117
    %1254 = vmatprep.subr.bf16.mxu0 %v1183
    %1255 = vmatpush1.bf16.msra.mxu0 %v1182
    %1256 = vmatprep.subr.bf16.mxu0 %v1175
    %1257 = vmatpush1.bf16.msra.mxu0 %v1174
    %1258 = vmatprep.subr.bf16.mxu0 %v1167
    %1259 = vmatpush1.bf16.msra.mxu0 %v1166
    %1260 = vmatprep.subr.bf16.mxu0 %v1159
    %1261 = vmatpush1.bf16.msra.mxu0 %v1158
    %1262 = vmatprep.subr.bf16.mxu0 %v1151
    %1263 = vmatpush1.bf16.msra.mxu0 %v1150
    %1264 = vmatprep.subr.bf16.mxu0 %v1143
    %1265 = vmatpush1.bf16.msra.mxu0 %v1142
    %1266 = vmatprep.subr.bf16.mxu0 %v1135
    %1267 = vmatpush1.bf16.msra.mxu0 %v1134
    %1268 = vmatprep.subr.bf16.mxu0 %v1127
    %1269 = vmatpush1.bf16.msra.mxu0 %v1126
    %1270 = vmatprep.subr.bf16.mxu0 0
    %1271 = vmatpush2.bf16.msra.mxu0 0
    %1272 = vmatprep.subr.bf16.mxu0 0
    %1273 = vmatpush2.bf16.msra.mxu0 0
    %1274 = vmatprep.subr.bf16.mxu0 0
    %1275 = vmatpush2.bf16.msra.mxu0 0
    %1276 = vmatprep.subr.bf16.mxu0 0
    %1277 = vmatpush2.bf16.msra.mxu0 0
    %1278 = vmatprep.subr.bf16.mxu0 0
    %1279 = vmatpush2.bf16.msra.mxu0 0
    %1280 = vmatprep.subr.bf16.mxu0 0
    %1281 = vmatpush2.bf16.msra.mxu0 0
    %1282 = vmatprep.subr.bf16.mxu0 0
    %1283 = vmatpush2.bf16.msra.mxu0 0
    %1284 = vmatprep.subr.bf16.mxu0 0
    %1285 = vmatpush2.bf16.msra.mxu0 0
    %1286 = vmatprep.mubr.bf16.mxu0 0
    %1287 = vmatmul.mubr.bf16.gmra.mxu0 %v827
    %v1288 = vpop.f32.mrf.mxu0
    %v1289 = vadd.f32 %v897, %v1288
    %v1290 = vpop.f32.mrf.mxu0
    %v1291 = vadd.f32 %v901, %v1290
    %v1292 = vpop.f32.mrf.mxu0
    %v1293 = vpop.f32.mrf.mxu0
    %1294 = vdwg.mxu0
    %1295 = vmatprep.subr.bf16.mxu0 %v1185
    %1296 = vmatpush1.bf16.msra.mxu0 %v1184
    %1297 = vmatprep.subr.bf16.mxu0 %v1177
    %1298 = vmatpush1.bf16.msra.mxu0 %v1176
    %1299 = vmatprep.subr.bf16.mxu0 %v1169
    %1300 = vmatpush1.bf16.msra.mxu0 %v1168
    %1301 = vmatprep.subr.bf16.mxu0 %v1161
    %1302 = vmatpush1.bf16.msra.mxu0 %v1160
    %1303 = vmatprep.subr.bf16.mxu0 %v1153
    %1304 = vmatpush1.bf16.msra.mxu0 %v1152
    %1305 = vmatprep.subr.bf16.mxu0 %v1145
    %1306 = vmatpush1.bf16.msra.mxu0 %v1144
    %1307 = vmatprep.subr.bf16.mxu0 %v1137
    %1308 = vmatpush1.bf16.msra.mxu0 %v1136
    %1309 = vmatprep.subr.bf16.mxu0 %v1129
    %1310 = vmatpush1.bf16.msra.mxu0 %v1128
    %1311 = vmatprep.subr.bf16.mxu0 0
    %1312 = vmatpush2.bf16.msra.mxu0 0
    %1313 = vmatprep.subr.bf16.mxu0 0
    %1314 = vmatpush2.bf16.msra.mxu0 0
    %1315 = vmatprep.subr.bf16.mxu0 0
    %1316 = vmatpush2.bf16.msra.mxu0 0
    %1317 = vmatprep.subr.bf16.mxu0 0
    %1318 = vmatpush2.bf16.msra.mxu0 0
    %1319 = vmatprep.subr.bf16.mxu0 0
    %1320 = vmatpush2.bf16.msra.mxu0 0
    %1321 = vmatprep.subr.bf16.mxu0 0
    %1322 = vmatpush2.bf16.msra.mxu0 0
    %1323 = vmatprep.subr.bf16.mxu0 0
    %1324 = vmatpush2.bf16.msra.mxu0 0
    %1325 = vmatprep.subr.bf16.mxu0 0
    %1326 = vmatpush2.bf16.msra.mxu0 0
    %1327 = vmatprep.mubr.bf16.mxu0 0
    %1328 = vmatmul.mubr.bf16.gmra.mxu0 %v827
    %v1329 = vpop.f32.mrf.mxu0
    %v1330 = vadd.f32 %v905, %v1329
    %v1331 = vpop.f32.mrf.mxu0
    %v1332 = vadd.f32 %v909, %v1331
    %v1333 = vpop.f32.mrf.mxu0
    %v1334 = vpop.f32.mrf.mxu0
    %1335 = vdwg.mxu0
    %1336 = vmatprep.subr.bf16.mxu0 %v1187
    %1337 = vmatpush1.bf16.msra.mxu0 %v1186
    %1338 = vmatprep.subr.bf16.mxu0 %v1179
    %1339 = vmatpush1.bf16.msra.mxu0 %v1178
    %1340 = vmatprep.subr.bf16.mxu0 %v1171
    %1341 = vmatpush1.bf16.msra.mxu0 %v1170
    %1342 = vmatprep.subr.bf16.mxu0 %v1163
    %1343 = vmatpush1.bf16.msra.mxu0 %v1162
    %1344 = vmatprep.subr.bf16.mxu0 %v1155
    %1345 = vmatpush1.bf16.msra.mxu0 %v1154
    %1346 = vmatprep.subr.bf16.mxu0 %v1147
    %1347 = vmatpush1.bf16.msra.mxu0 %v1146
    %1348 = vmatprep.subr.bf16.mxu0 %v1139
    %1349 = vmatpush1.bf16.msra.mxu0 %v1138
    %1350 = vmatprep.subr.bf16.mxu0 %v1131
    %1351 = vmatpush1.bf16.msra.mxu0 %v1130
    %1352 = vmatprep.subr.bf16.mxu0 0
    %1353 = vmatpush2.bf16.msra.mxu0 0
    %1354 = vmatprep.subr.bf16.mxu0 0
    %1355 = vmatpush2.bf16.msra.mxu0 0
    %1356 = vmatprep.subr.bf16.mxu0 0
    %1357 = vmatpush2.bf16.msra.mxu0 0
    %1358 = vmatprep.subr.bf16.mxu0 0
    %1359 = vmatpush2.bf16.msra.mxu0 0
    %1360 = vmatprep.subr.bf16.mxu0 0
    %1361 = vmatpush2.bf16.msra.mxu0 0
    %1362 = vmatprep.subr.bf16.mxu0 0
    %1363 = vmatpush2.bf16.msra.mxu0 0
    %1364 = vmatprep.subr.bf16.mxu0 0
    %1365 = vmatpush2.bf16.msra.mxu0 0
    %1366 = vmatprep.subr.bf16.mxu0 0
    %1367 = vmatpush2.bf16.msra.mxu0 0
    %1368 = vmatprep.mubr.bf16.mxu0 0
    %1369 = vmatmul.mubr.bf16.gmra.mxu0 %v827
    %v1370 = vpop.f32.mrf.mxu0
    %v1371 = vadd.f32 %v913, %v1370
    %v1372 = vpop.f32.mrf.mxu0
    %v1373 = vadd.f32 %v917, %v1372
    %v1374 = vpop.f32.mrf.mxu0
    %v1375 = vpop.f32.mrf.mxu0
    %1376 = vdwg.mxu0
    %1377 = vmatprep.subr.bf16.mxu0 %v1189
    %1378 = vmatpush1.bf16.msra.mxu0 %v1188
    %1379 = vmatprep.subr.bf16.mxu0 %v1181
    %1380 = vmatpush1.bf16.msra.mxu0 %v1180
    %1381 = vmatprep.subr.bf16.mxu0 %v1173
    %1382 = vmatpush1.bf16.msra.mxu0 %v1172
    %1383 = vmatprep.subr.bf16.mxu0 %v1165
    %1384 = vmatpush1.bf16.msra.mxu0 %v1164
    %1385 = vmatprep.subr.bf16.mxu0 %v1157
    %1386 = vmatpush1.bf16.msra.mxu0 %v1156
    %1387 = vmatprep.subr.bf16.mxu0 %v1149
    %1388 = vmatpush1.bf16.msra.mxu0 %v1148
    %1389 = vmatprep.subr.bf16.mxu0 %v1141
    %1390 = vmatpush1.bf16.msra.mxu0 %v1140
    %1391 = vmatprep.subr.bf16.mxu0 %v1133
    %1392 = vmatpush1.bf16.msra.mxu0 %v1132
    %1393 = vmatprep.subr.bf16.mxu0 0
    %1394 = vmatpush2.bf16.msra.mxu0 0
    %1395 = vmatprep.subr.bf16.mxu0 0
    %1396 = vmatpush2.bf16.msra.mxu0 0
    %1397 = vmatprep.subr.bf16.mxu0 0
    %1398 = vmatpush2.bf16.msra.mxu0 0
    %1399 = vmatprep.subr.bf16.mxu0 0
    %1400 = vmatpush2.bf16.msra.mxu0 0
    %1401 = vmatprep.subr.bf16.mxu0 0
    %1402 = vmatpush2.bf16.msra.mxu0 0
    %1403 = vmatprep.subr.bf16.mxu0 0
    %1404 = vmatpush2.bf16.msra.mxu0 0
    %1405 = vmatprep.subr.bf16.mxu0 0
    %1406 = vmatpush2.bf16.msra.mxu0 0
    %1407 = vmatprep.subr.bf16.mxu0 0
    %1408 = vmatpush2.bf16.msra.mxu0 0
    %1409 = vmatprep.mubr.bf16.mxu0 0
    %1410 = vmatmul.mubr.bf16.gmra.mxu0 %v827
    %v1411 = vpop.f32.mrf.mxu0
    %v1412 = vadd.f32 %v921, %v1411
    %v1413 = vpop.f32.mrf.mxu0
    %v1414 = vadd.f32 %v925, %v1413
    %v1415 = vpop.f32.mrf.mxu0
    %v1416 = vpop.f32.mrf.mxu0
    %1417 = vdwg.mxu0
    %v1418 = vmax.f32 %v1289, 0.0
    %v1419 = vmax.f32 %v1291, 0.0
    %v1420 = vmax.f32 %v1330, 0.0
    %v1421 = vmax.f32 %v1332, 0.0
    %v1422 = vmax.f32 %v1371, 0.0
    %v1423 = vmax.f32 %v1373, 0.0
    %v1424 = vmax.f32 %v1412, 0.0
    %v1425 = vmax.f32 %v1414, 0.0
    %v1426 = vld [vmem:[%s11] sm:$0xff]
    %v1427 = vpack.c.bf16 %v1418, %v1418
    %v1428 = vpack.c.bf16 %v1419, %v1419
    %v1429 = vpack.c.bf16 %v1420, %v1420
    %v1430 = vpack.c.bf16 %v1421, %v1421
    %v1431 = vpack.c.bf16 %v1422, %v1422
    %v1432 = vpack.c.bf16 %v1423, %v1423
    %v1433 = vpack.c.bf16 %v1424, %v1424
    %v1434 = vpack.c.bf16 %v1425, %v1425
    %v1435 = vld [vmem:[%s8] sm:$0xf]
    %v1436 = vld [vmem:[%s8 + $0x4] sm:$0xf]
    %v1437 = vld [vmem:[%s8 + $0x8] sm:$0xf]
    %v1438 = vld [vmem:[%s8 + $0xc] sm:$0xf]
    %v1439 = vld [vmem:[%s8 + $0x10] sm:$0xf]
    %v1440 = vld [vmem:[%s8 + $0x14] sm:$0xf]
    %v1441 = vld [vmem:[%s8 + $0x18] sm:$0xf]
    %v1442 = vld [vmem:[%s8 + $0x1c] sm:$0xf]
    %v1443 = vld [vmem:[%s8 + $0x20] sm:$0xf]
    %v1444 = vld [vmem:[%s8 + $0x24] sm:$0xf]
    %v1445 = vld [vmem:[%s8 + $0x28] sm:$0xf]
    %v1446 = vld [vmem:[%s8 + $0x2c] sm:$0xf]
    %v1447 = vld [vmem:[%s8 + $0x30] sm:$0xf]
    %v1448 = vld [vmem:[%s8 + $0x34] sm:$0xf]
    %v1449 = vld [vmem:[%s8 + $0x38] sm:$0xf]
    %v1450 = vld [vmem:[%s8 + $0x3c] sm:$0xf]
    %v1451 = vld [vmem:[%s8 + $0x40] sm:$0xf]
    %v1452 = vld [vmem:[%s8 + $0x44] sm:$0xf]
    %v1453 = vld [vmem:[%s8 + $0x48] sm:$0xf]
    %v1454 = vld [vmem:[%s8 + $0x4c] sm:$0xf]
    %v1455 = vld [vmem:[%s8 + $0x50] sm:$0xf]
    %v1456 = vld [vmem:[%s8 + $0x54] sm:$0xf]
    %v1457 = vld [vmem:[%s8 + $0x58] sm:$0xf]
    %v1458 = vld [vmem:[%s8 + $0x5c] sm:$0xf]
    %v1459 = vld [vmem:[%s8 + $0x60] sm:$0xf]
    %v1460 = vld [vmem:[%s8 + $0x64] sm:$0xf]
    %v1461 = vld [vmem:[%s8 + $0x68] sm:$0xf]
    %v1462 = vld [vmem:[%s8 + $0x6c] sm:$0xf]
    %v1463 = vld [vmem:[%s8 + $0x70] sm:$0xf]
    %v1464 = vld [vmem:[%s8 + $0x74] sm:$0xf]
    %v1465 = vld [vmem:[%s8 + $0x78] sm:$0xf]
    %v1466 = vld [vmem:[%s8 + $0x7c] sm:$0xf]
    %v1467 = vld [vmem:[%s8 + $0x80] sm:$0xf]
    %v1468 = vld [vmem:[%s8 + $0x84] sm:$0xf]
    %v1469 = vld [vmem:[%s8 + $0x88] sm:$0xf]
    %v1470 = vld [vmem:[%s8 + $0x8c] sm:$0xf]
    %v1471 = vld [vmem:[%s8 + $0x90] sm:$0xf]
    %v1472 = vld [vmem:[%s8 + $0x94] sm:$0xf]
    %v1473 = vld [vmem:[%s8 + $0x98] sm:$0xf]
    %v1474 = vld [vmem:[%s8 + $0x9c] sm:$0xf]
    %v1475 = vld [vmem:[%s8 + $0xa0] sm:$0xf]
    %v1476 = vld [vmem:[%s8 + $0xa4] sm:$0xf]
    %v1477 = vld [vmem:[%s8 + $0xa8] sm:$0xf]
    %v1478 = vld [vmem:[%s8 + $0xac] sm:$0xf]
    %v1479 = vld [vmem:[%s8 + $0xb0] sm:$0xf]
    %v1480 = vld [vmem:[%s8 + $0xb4] sm:$0xf]
    %v1481 = vld [vmem:[%s8 + $0xb8] sm:$0xf]
    %v1482 = vld [vmem:[%s8 + $0xbc] sm:$0xf]
    %v1483 = vld [vmem:[%s8 + $0xc0] sm:$0xf]
    %v1484 = vld [vmem:[%s8 + $0xc4] sm:$0xf]
    %v1485 = vld [vmem:[%s8 + $0xc8] sm:$0xf]
    %v1486 = vld [vmem:[%s8 + $0xcc] sm:$0xf]
    %v1487 = vld [vmem:[%s8 + $0xd0] sm:$0xf]
    %v1488 = vld [vmem:[%s8 + $0xd4] sm:$0xf]
    %v1489 = vld [vmem:[%s8 + $0xd8] sm:$0xf]
    %v1490 = vld [vmem:[%s8 + $0xdc] sm:$0xf]
    %v1491 = vld [vmem:[%s8 + $0xe0] sm:$0xf]
    %v1492 = vld [vmem:[%s8 + $0xe4] sm:$0xf]
    %v1493 = vld [vmem:[%s8 + $0xe8] sm:$0xf]
    %v1494 = vld [vmem:[%s8 + $0xec] sm:$0xf]
    %v1495 = vld [vmem:[%s8 + $0xf0] sm:$0xf]
    %v1496 = vld [vmem:[%s8 + $0xf4] sm:$0xf]
    %v1497 = vld [vmem:[%s8 + $0xf8] sm:$0xf]
    %v1498 = vld [vmem:[%s8 + $0xfc] sm:$0xf]
    %v1499 = vld [vmem:[%s8 + $0x100] sm:$0xf]
    %v1500 = vld [vmem:[%s8 + $0x104] sm:$0xf]
    %v1501 = vld [vmem:[%s8 + $0x108] sm:$0xf]
    %v1502 = vld [vmem:[%s8 + $0x10c] sm:$0xf]
    %v1503 = vld [vmem:[%s8 + $0x110] sm:$0xf]
    %v1504 = vld [vmem:[%s8 + $0x114] sm:$0xf]
    %v1505 = vld [vmem:[%s8 + $0x118] sm:$0xf]
    %v1506 = vld [vmem:[%s8 + $0x11c] sm:$0xf]
    %v1507 = vld [vmem:[%s8 + $0x120] sm:$0xf]
    %v1508 = vld [vmem:[%s8 + $0x124] sm:$0xf]
    %v1509 = vld [vmem:[%s8 + $0x128] sm:$0xf]
    %v1510 = vld [vmem:[%s8 + $0x12c] sm:$0xf]
    %v1511 = vld [vmem:[%s8 + $0x130] sm:$0xf]
    %v1512 = vld [vmem:[%s8 + $0x134] sm:$0xf]
    %v1513 = vld [vmem:[%s8 + $0x138] sm:$0xf]
    %v1514 = vld [vmem:[%s8 + $0x13c] sm:$0xf]
    %v1515 = vld [vmem:[%s8 + $0x140] sm:$0xf]
    %v1516 = vld [vmem:[%s8 + $0x144] sm:$0xf]
    %v1517 = vld [vmem:[%s8 + $0x148] sm:$0xf]
    %v1518 = vld [vmem:[%s8 + $0x14c] sm:$0xf]
    %v1519 = vld [vmem:[%s8 + $0x150] sm:$0xf]
    %v1520 = vld [vmem:[%s8 + $0x154] sm:$0xf]
    %v1521 = vld [vmem:[%s8 + $0x158] sm:$0xf]
    %v1522 = vld [vmem:[%s8 + $0x15c] sm:$0xf]
    %v1523 = vld [vmem:[%s8 + $0x160] sm:$0xf]
    %v1524 = vld [vmem:[%s8 + $0x164] sm:$0xf]
    %v1525 = vld [vmem:[%s8 + $0x168] sm:$0xf]
    %v1526 = vld [vmem:[%s8 + $0x16c] sm:$0xf]
    %v1527 = vld [vmem:[%s8 + $0x170] sm:$0xf]
    %v1528 = vld [vmem:[%s8 + $0x174] sm:$0xf]
    %v1529 = vld [vmem:[%s8 + $0x178] sm:$0xf]
    %v1530 = vld [vmem:[%s8 + $0x17c] sm:$0xf]
    %v1531 = vld [vmem:[%s8 + $0x180] sm:$0xf]
    %v1532 = vld [vmem:[%s8 + $0x184] sm:$0xf]
    %v1533 = vld [vmem:[%s8 + $0x188] sm:$0xf]
    %v1534 = vld [vmem:[%s8 + $0x18c] sm:$0xf]
    %v1535 = vld [vmem:[%s8 + $0x190] sm:$0xf]
    %v1536 = vld [vmem:[%s8 + $0x194] sm:$0xf]
    %v1537 = vld [vmem:[%s8 + $0x198] sm:$0xf]
    %v1538 = vld [vmem:[%s8 + $0x19c] sm:$0xf]
    %v1539 = vld [vmem:[%s8 + $0x1a0] sm:$0xf]
    %v1540 = vld [vmem:[%s8 + $0x1a4] sm:$0xf]
    %v1541 = vld [vmem:[%s8 + $0x1a8] sm:$0xf]
    %v1542 = vld [vmem:[%s8 + $0x1ac] sm:$0xf]
    %v1543 = vld [vmem:[%s8 + $0x1b0] sm:$0xf]
    %v1544 = vld [vmem:[%s8 + $0x1b4] sm:$0xf]
    %v1545 = vld [vmem:[%s8 + $0x1b8] sm:$0xf]
    %v1546 = vld [vmem:[%s8 + $0x1bc] sm:$0xf]
    %v1547 = vld [vmem:[%s8 + $0x1c0] sm:$0xf]
    %v1548 = vld [vmem:[%s8 + $0x1c4] sm:$0xf]
    %v1549 = vld [vmem:[%s8 + $0x1c8] sm:$0xf]
    %v1550 = vld [vmem:[%s8 + $0x1cc] sm:$0xf]
    %v1551 = vld [vmem:[%s8 + $0x1d0] sm:$0xf]
    %v1552 = vld [vmem:[%s8 + $0x1d4] sm:$0xf]
    %v1553 = vld [vmem:[%s8 + $0x1d8] sm:$0xf]
    %v1554 = vld [vmem:[%s8 + $0x1dc] sm:$0xf]
    %v1555 = vld [vmem:[%s8 + $0x1e0] sm:$0xf]
    %v1556 = vld [vmem:[%s8 + $0x1e4] sm:$0xf]
    %v1557 = vld [vmem:[%s8 + $0x1e8] sm:$0xf]
    %v1558 = vld [vmem:[%s8 + $0x1ec] sm:$0xf]
    %v1559 = vld [vmem:[%s8 + $0x1f0] sm:$0xf]
    %v1560 = vld [vmem:[%s8 + $0x1f4] sm:$0xf]
    %v1561 = vld [vmem:[%s8 + $0x1f8] sm:$0xf]
    %v1562 = vld [vmem:[%s8 + $0x1fc] sm:$0xf]
    %v1691 = vunpack.c.l.b16 %v1435
    %v1692 = vunpack.c.l.b16 %v1436
    %v1693 = vunpack.c.l.b16 %v1437
    %v1694 = vunpack.c.l.b16 %v1438
    %v1695 = vunpack.c.l.b16 %v1439
    %v1696 = vunpack.c.l.b16 %v1440
    %v1697 = vunpack.c.l.b16 %v1441
    %v1698 = vunpack.c.l.b16 %v1442
    %v1699 = vunpack.c.l.b16 %v1443
    %v1700 = vunpack.c.l.b16 %v1444
    %v1701 = vunpack.c.l.b16 %v1445
    %v1702 = vunpack.c.l.b16 %v1446
    %v1703 = vunpack.c.l.b16 %v1447
    %v1704 = vunpack.c.l.b16 %v1448
    %v1705 = vunpack.c.l.b16 %v1449
    %v1706 = vunpack.c.l.b16 %v1450
    %v1707 = vunpack.c.l.b16 %v1451
    %v1708 = vunpack.c.l.b16 %v1452
    %v1709 = vunpack.c.l.b16 %v1453
    %v1710 = vunpack.c.l.b16 %v1454
    %v1711 = vunpack.c.l.b16 %v1455
    %v1712 = vunpack.c.l.b16 %v1456
    %v1713 = vunpack.c.l.b16 %v1457
    %v1714 = vunpack.c.l.b16 %v1458
    %v1715 = vunpack.c.l.b16 %v1459
    %v1716 = vunpack.c.l.b16 %v1460
    %v1717 = vunpack.c.l.b16 %v1461
    %v1718 = vunpack.c.l.b16 %v1462
    %v1719 = vunpack.c.l.b16 %v1463
    %v1720 = vunpack.c.l.b16 %v1464
    %v1721 = vunpack.c.l.b16 %v1465
    %v1722 = vunpack.c.l.b16 %v1466
    %v1723 = vunpack.c.l.b16 %v1467
    %v1724 = vunpack.c.l.b16 %v1468
    %v1725 = vunpack.c.l.b16 %v1469
    %v1726 = vunpack.c.l.b16 %v1470
    %v1727 = vunpack.c.l.b16 %v1471
    %v1728 = vunpack.c.l.b16 %v1472
    %v1729 = vunpack.c.l.b16 %v1473
    %v1730 = vunpack.c.l.b16 %v1474
    %v1731 = vunpack.c.l.b16 %v1475
    %v1732 = vunpack.c.l.b16 %v1476
    %v1733 = vunpack.c.l.b16 %v1477
    %v1734 = vunpack.c.l.b16 %v1478
    %v1735 = vunpack.c.l.b16 %v1479
    %v1736 = vunpack.c.l.b16 %v1480
    %v1737 = vunpack.c.l.b16 %v1481
    %v1738 = vunpack.c.l.b16 %v1482
    %v1739 = vunpack.c.l.b16 %v1483
    %v1740 = vunpack.c.l.b16 %v1484
    %v1741 = vunpack.c.l.b16 %v1485
    %v1742 = vunpack.c.l.b16 %v1486
    %v1743 = vunpack.c.l.b16 %v1487
    %v1744 = vunpack.c.l.b16 %v1488
    %v1745 = vunpack.c.l.b16 %v1489
    %v1746 = vunpack.c.l.b16 %v1490
    %v1747 = vunpack.c.l.b16 %v1491
    %v1748 = vunpack.c.l.b16 %v1492
    %v1749 = vunpack.c.l.b16 %v1493
    %v1750 = vunpack.c.l.b16 %v1494
    %v1751 = vunpack.c.l.b16 %v1495
    %v1752 = vunpack.c.l.b16 %v1496
    %v1753 = vunpack.c.l.b16 %v1497
    %v1754 = vunpack.c.l.b16 %v1498
    %v1755 = vunpack.c.l.b16 %v1499
    %v1756 = vunpack.c.l.b16 %v1500
    %v1757 = vunpack.c.l.b16 %v1501
    %v1758 = vunpack.c.l.b16 %v1502
    %v1759 = vunpack.c.l.b16 %v1503
    %v1760 = vunpack.c.l.b16 %v1504
    %v1761 = vunpack.c.l.b16 %v1505
    %v1762 = vunpack.c.l.b16 %v1506
    %v1763 = vunpack.c.l.b16 %v1507
    %v1764 = vunpack.c.l.b16 %v1508
    %v1765 = vunpack.c.l.b16 %v1509
    %v1766 = vunpack.c.l.b16 %v1510
    %v1767 = vunpack.c.l.b16 %v1511
    %v1768 = vunpack.c.l.b16 %v1512
    %v1769 = vunpack.c.l.b16 %v1513
    %v1770 = vunpack.c.l.b16 %v1514
    %v1771 = vunpack.c.l.b16 %v1515
    %v1772 = vunpack.c.l.b16 %v1516
    %v1773 = vunpack.c.l.b16 %v1517
    %v1774 = vunpack.c.l.b16 %v1518
    %v1775 = vunpack.c.l.b16 %v1519
    %v1776 = vunpack.c.l.b16 %v1520
    %v1777 = vunpack.c.l.b16 %v1521
    %v1778 = vunpack.c.l.b16 %v1522
    %v1779 = vunpack.c.l.b16 %v1523
    %v1780 = vunpack.c.l.b16 %v1524
    %v1781 = vunpack.c.l.b16 %v1525
    %v1782 = vunpack.c.l.b16 %v1526
    %v1783 = vunpack.c.l.b16 %v1527
    %v1784 = vunpack.c.l.b16 %v1528
    %v1785 = vunpack.c.l.b16 %v1529
    %v1786 = vunpack.c.l.b16 %v1530
    %v1787 = vunpack.c.l.b16 %v1531
    %v1788 = vunpack.c.l.b16 %v1532
    %v1789 = vunpack.c.l.b16 %v1533
    %v1790 = vunpack.c.l.b16 %v1534
    %v1791 = vunpack.c.l.b16 %v1535
    %v1792 = vunpack.c.l.b16 %v1536
    %v1793 = vunpack.c.l.b16 %v1537
    %v1794 = vunpack.c.l.b16 %v1538
    %v1795 = vunpack.c.l.b16 %v1539
    %v1796 = vunpack.c.l.b16 %v1540
    %v1797 = vunpack.c.l.b16 %v1541
    %v1798 = vunpack.c.l.b16 %v1542
    %v1799 = vunpack.c.l.b16 %v1543
    %v1800 = vunpack.c.l.b16 %v1544
    %v1801 = vunpack.c.l.b16 %v1545
    %v1802 = vunpack.c.l.b16 %v1546
    %v1803 = vunpack.c.l.b16 %v1547
    %v1804 = vunpack.c.l.b16 %v1548
    %v1805 = vunpack.c.l.b16 %v1549
    %v1806 = vunpack.c.l.b16 %v1550
    %v1807 = vunpack.c.l.b16 %v1551
    %v1808 = vunpack.c.l.b16 %v1552
    %v1809 = vunpack.c.l.b16 %v1553
    %v1810 = vunpack.c.l.b16 %v1554
    %v1811 = vunpack.c.l.b16 %v1555
    %v1812 = vunpack.c.l.b16 %v1556
    %v1813 = vunpack.c.l.b16 %v1557
    %v1814 = vunpack.c.l.b16 %v1558
    %v1815 = vunpack.c.l.b16 %v1559
    %v1816 = vunpack.c.l.b16 %v1560
    %v1817 = vunpack.c.l.b16 %v1561
    %v1818 = vunpack.c.l.b16 %v1562
    %v1819 = vpack.c.b16 %v1692, %v1691
    %v1820 = vpack.c.b16 %v1694, %v1693
    %v1821 = vpack.c.b16 %v1696, %v1695
    %v1822 = vpack.c.b16 %v1698, %v1697
    %v1823 = vpack.c.b16 %v1700, %v1699
    %v1824 = vpack.c.b16 %v1702, %v1701
    %v1825 = vpack.c.b16 %v1704, %v1703
    %v1826 = vpack.c.b16 %v1706, %v1705
    %v1827 = vpack.c.b16 %v1708, %v1707
    %v1828 = vpack.c.b16 %v1710, %v1709
    %v1829 = vpack.c.b16 %v1712, %v1711
    %v1830 = vpack.c.b16 %v1714, %v1713
    %v1831 = vpack.c.b16 %v1716, %v1715
    %v1832 = vpack.c.b16 %v1718, %v1717
    %v1833 = vpack.c.b16 %v1720, %v1719
    %v1834 = vpack.c.b16 %v1722, %v1721
    %v1835 = vpack.c.b16 %v1724, %v1723
    %v1836 = vpack.c.b16 %v1726, %v1725
    %v1837 = vpack.c.b16 %v1728, %v1727
    %v1838 = vpack.c.b16 %v1730, %v1729
    %v1839 = vpack.c.b16 %v1732, %v1731
    %v1840 = vpack.c.b16 %v1734, %v1733
    %v1841 = vpack.c.b16 %v1736, %v1735
    %v1842 = vpack.c.b16 %v1738, %v1737
    %v1843 = vpack.c.b16 %v1740, %v1739
    %v1844 = vpack.c.b16 %v1742, %v1741
    %v1845 = vpack.c.b16 %v1744, %v1743
    %v1846 = vpack.c.b16 %v1746, %v1745
    %v1847 = vpack.c.b16 %v1748, %v1747
    %v1848 = vpack.c.b16 %v1750, %v1749
    %v1849 = vpack.c.b16 %v1752, %v1751
    %v1850 = vpack.c.b16 %v1754, %v1753
    %v1851 = vpack.c.b16 %v1756, %v1755
    %v1852 = vpack.c.b16 %v1758, %v1757
    %v1853 = vpack.c.b16 %v1760, %v1759
    %v1854 = vpack.c.b16 %v1762, %v1761
    %v1855 = vpack.c.b16 %v1764, %v1763
    %v1856 = vpack.c.b16 %v1766, %v1765
    %v1857 = vpack.c.b16 %v1768, %v1767
    %v1858 = vpack.c.b16 %v1770, %v1769
    %v1859 = vpack.c.b16 %v1772, %v1771
    %v1860 = vpack.c.b16 %v1774, %v1773
    %v1861 = vpack.c.b16 %v1776, %v1775
    %v1862 = vpack.c.b16 %v1778, %v1777
    %v1863 = vpack.c.b16 %v1780, %v1779
    %v1864 = vpack.c.b16 %v1782, %v1781
    %v1865 = vpack.c.b16 %v1784, %v1783
    %v1866 = vpack.c.b16 %v1786, %v1785
    %v1867 = vpack.c.b16 %v1788, %v1787
    %v1868 = vpack.c.b16 %v1790, %v1789
    %v1869 = vpack.c.b16 %v1792, %v1791
    %v1870 = vpack.c.b16 %v1794, %v1793
    %v1871 = vpack.c.b16 %v1796, %v1795
    %v1872 = vpack.c.b16 %v1798, %v1797
    %v1873 = vpack.c.b16 %v1800, %v1799
    %v1874 = vpack.c.b16 %v1802, %v1801
    %v1875 = vpack.c.b16 %v1804, %v1803
    %v1876 = vpack.c.b16 %v1806, %v1805
    %v1877 = vpack.c.b16 %v1808, %v1807
    %v1878 = vpack.c.b16 %v1810, %v1809
    %v1879 = vpack.c.b16 %v1812, %v1811
    %v1880 = vpack.c.b16 %v1814, %v1813
    %v1881 = vpack.c.b16 %v1816, %v1815
    %v1882 = vpack.c.b16 %v1818, %v1817
    %1947 = vmatprep.subr.bf16.mxu0 0
    %1948 = vmatpush1.bf16.msra.mxu0 %v1826
    %1949 = vmatprep.subr.bf16.mxu0 0
    %1950 = vmatpush1.bf16.msra.mxu0 %v1825
    %1951 = vmatprep.subr.bf16.mxu0 0
    %1952 = vmatpush1.bf16.msra.mxu0 %v1824
    %1953 = vmatprep.subr.bf16.mxu0 0
    %1954 = vmatpush1.bf16.msra.mxu0 %v1823
    %1955 = vmatprep.subr.bf16.mxu0 0
    %1956 = vmatpush1.bf16.msra.mxu0 %v1822
    %1957 = vmatprep.subr.bf16.mxu0 0
    %1958 = vmatpush1.bf16.msra.mxu0 %v1821
    %1959 = vmatprep.subr.bf16.mxu0 0
    %1960 = vmatpush1.bf16.msra.mxu0 %v1820
    %1961 = vmatprep.subr.bf16.mxu0 0
    %1962 = vmatpush1.bf16.msra.mxu0 %v1819
    %1963 = vmatprep.subr.bf16.mxu0 0
    %1964 = vmatpush2.bf16.msra.mxu0 %v1834
    %1965 = vmatprep.subr.bf16.mxu0 0
    %1966 = vmatpush2.bf16.msra.mxu0 %v1833
    %1967 = vmatprep.subr.bf16.mxu0 0
    %1968 = vmatpush2.bf16.msra.mxu0 %v1832
    %1969 = vmatprep.subr.bf16.mxu0 0
    %1970 = vmatpush2.bf16.msra.mxu0 %v1831
    %1971 = vmatprep.subr.bf16.mxu0 0
    %1972 = vmatpush2.bf16.msra.mxu0 %v1830
    %1973 = vmatprep.subr.bf16.mxu0 0
    %1974 = vmatpush2.bf16.msra.mxu0 %v1829
    %1975 = vmatprep.subr.bf16.mxu0 0
    %1976 = vmatpush2.bf16.msra.mxu0 %v1828
    %1977 = vmatprep.subr.bf16.mxu0 0
    %1978 = vmatpush2.bf16.msra.mxu0 %v1827
    %1979 = vmatprep.mubr.bf16.mxu0 %v1428
    %1980 = vmatmul.mubr.bf16.gmra.mxu0 %v1427
    %v1981 = vpop.f32.mrf.mxu0
    %v1982 = vadd.f32 0.0, %v1981
    %v1983 = vpop.f32.mrf.mxu0
    %v1984 = vpop.f32.mrf.mxu0
    %v1985 = vpop.f32.mrf.mxu0
    %1986 = vdwg.mxu0
    %1987 = vmatprep.subr.bf16.mxu0 0
    %1988 = vmatpush1.bf16.msra.mxu0 %v1842
    %1989 = vmatprep.subr.bf16.mxu0 0
    %1990 = vmatpush1.bf16.msra.mxu0 %v1841
    %1991 = vmatprep.subr.bf16.mxu0 0
    %1992 = vmatpush1.bf16.msra.mxu0 %v1840
    %1993 = vmatprep.subr.bf16.mxu0 0
    %1994 = vmatpush1.bf16.msra.mxu0 %v1839
    %1995 = vmatprep.subr.bf16.mxu0 0
    %1996 = vmatpush1.bf16.msra.mxu0 %v1838
    %1997 = vmatprep.subr.bf16.mxu0 0
    %1998 = vmatpush1.bf16.msra.mxu0 %v1837
    %1999 = vmatprep.subr.bf16.mxu0 0
    %2000 = vmatpush1.bf16.msra.mxu0 %v1836
    %2001 = vmatprep.subr.bf16.mxu0 0
    %2002 = vmatpush1.bf16.msra.mxu0 %v1835
    %2003 = vmatprep.subr.bf16.mxu0 0
    %2004 = vmatpush2.bf16.msra.mxu0 %v1850
    %2005 = vmatprep.subr.bf16.mxu0 0
    %2006 = vmatpush2.bf16.msra.mxu0 %v1849
    %2007 = vmatprep.subr.bf16.mxu0 0
    %2008 = vmatpush2.bf16.msra.mxu0 %v1848
    %2009 = vmatprep.subr.bf16.mxu0 0
    %2010 = vmatpush2.bf16.msra.mxu0 %v1847
    %2011 = vmatprep.subr.bf16.mxu0 0
    %2012 = vmatpush2.bf16.msra.mxu0 %v1846
    %2013 = vmatprep.subr.bf16.mxu0 0
    %2014 = vmatpush2.bf16.msra.mxu0 %v1845
    %2015 = vmatprep.subr.bf16.mxu0 0
    %2016 = vmatpush2.bf16.msra.mxu0 %v1844
    %2017 = vmatprep.subr.bf16.mxu0 0
    %2018 = vmatpush2.bf16.msra.mxu0 %v1843
    %2019 = vmatprep.mubr.bf16.mxu0 %v1430
    %2020 = vmatmul.mubr.bf16.gmra.mxu0 %v1429
    %v2021 = vpop.f32.mrf.mxu0
    %v2022 = vadd.f32 %v1982, %v2021
    %v2023 = vpop.f32.mrf.mxu0
    %v2024 = vpop.f32.mrf.mxu0
    %v2025 = vpop.f32.mrf.mxu0
    %2026 = vdwg.mxu0
    %2027 = vmatprep.subr.bf16.mxu0 0
    %2028 = vmatpush1.bf16.msra.mxu0 %v1858
    %2029 = vmatprep.subr.bf16.mxu0 0
    %2030 = vmatpush1.bf16.msra.mxu0 %v1857
    %2031 = vmatprep.subr.bf16.mxu0 0
    %2032 = vmatpush1.bf16.msra.mxu0 %v1856
    %2033 = vmatprep.subr.bf16.mxu0 0
    %2034 = vmatpush1.bf16.msra.mxu0 %v1855
    %2035 = vmatprep.subr.bf16.mxu0 0
    %2036 = vmatpush1.bf16.msra.mxu0 %v1854
    %2037 = vmatprep.subr.bf16.mxu0 0
    %2038 = vmatpush1.bf16.msra.mxu0 %v1853
    %2039 = vmatprep.subr.bf16.mxu0 0
    %2040 = vmatpush1.bf16.msra.mxu0 %v1852
    %2041 = vmatprep.subr.bf16.mxu0 0
    %2042 = vmatpush1.bf16.msra.mxu0 %v1851
    %2043 = vmatprep.subr.bf16.mxu0 0
    %2044 = vmatpush2.bf16.msra.mxu0 %v1866
    %2045 = vmatprep.subr.bf16.mxu0 0
    %2046 = vmatpush2.bf16.msra.mxu0 %v1865
    %2047 = vmatprep.subr.bf16.mxu0 0
    %2048 = vmatpush2.bf16.msra.mxu0 %v1864
    %2049 = vmatprep.subr.bf16.mxu0 0
    %2050 = vmatpush2.bf16.msra.mxu0 %v1863
    %2051 = vmatprep.subr.bf16.mxu0 0
    %2052 = vmatpush2.bf16.msra.mxu0 %v1862
    %2053 = vmatprep.subr.bf16.mxu0 0
    %2054 = vmatpush2.bf16.msra.mxu0 %v1861
    %2055 = vmatprep.subr.bf16.mxu0 0
    %2056 = vmatpush2.bf16.msra.mxu0 %v1860
    %2057 = vmatprep.subr.bf16.mxu0 0
    %2058 = vmatpush2.bf16.msra.mxu0 %v1859
    %2059 = vmatprep.mubr.bf16.mxu0 %v1432
    %2060 = vmatmul.mubr.bf16.gmra.mxu0 %v1431
    %v2061 = vpop.f32.mrf.mxu0
    %v2062 = vadd.f32 %v2022, %v2061
    %v2063 = vpop.f32.mrf.mxu0
    %v2064 = vpop.f32.mrf.mxu0
    %v2065 = vpop.f32.mrf.mxu0
    %2066 = vdwg.mxu0
    %2067 = vmatprep.subr.bf16.mxu0 0
    %2068 = vmatpush1.bf16.msra.mxu0 %v1874
    %2069 = vmatprep.subr.bf16.mxu0 0
    %2070 = vmatpush1.bf16.msra.mxu0 %v1873
    %2071 = vmatprep.subr.bf16.mxu0 0
    %2072 = vmatpush1.bf16.msra.mxu0 %v1872
    %2073 = vmatprep.subr.bf16.mxu0 0
    %2074 = vmatpush1.bf16.msra.mxu0 %v1871
    %2075 = vmatprep.subr.bf16.mxu0 0
    %2076 = vmatpush1.bf16.msra.mxu0 %v1870
    %2077 = vmatprep.subr.bf16.mxu0 0
    %2078 = vmatpush1.bf16.msra.mxu0 %v1869
    %2079 = vmatprep.subr.bf16.mxu0 0
    %2080 = vmatpush1.bf16.msra.mxu0 %v1868
    %2081 = vmatprep.subr.bf16.mxu0 0
    %2082 = vmatpush1.bf16.msra.mxu0 %v1867
    %2083 = vmatprep.subr.bf16.mxu0 0
    %2084 = vmatpush2.bf16.msra.mxu0 %v1882
    %2085 = vmatprep.subr.bf16.mxu0 0
    %2086 = vmatpush2.bf16.msra.mxu0 %v1881
    %2087 = vmatprep.subr.bf16.mxu0 0
    %2088 = vmatpush2.bf16.msra.mxu0 %v1880
    %2089 = vmatprep.subr.bf16.mxu0 0
    %2090 = vmatpush2.bf16.msra.mxu0 %v1879
    %2091 = vmatprep.subr.bf16.mxu0 0
    %2092 = vmatpush2.bf16.msra.mxu0 %v1878
    %2093 = vmatprep.subr.bf16.mxu0 0
    %2094 = vmatpush2.bf16.msra.mxu0 %v1877
    %2095 = vmatprep.subr.bf16.mxu0 0
    %2096 = vmatpush2.bf16.msra.mxu0 %v1876
    %2097 = vmatprep.subr.bf16.mxu0 0
    %2098 = vmatpush2.bf16.msra.mxu0 %v1875
    %2099 = vmatprep.mubr.bf16.mxu0 %v1434
    %2100 = vmatmul.mubr.bf16.gmra.mxu0 %v1433
    %v2101 = vpop.f32.mrf.mxu0
    %v2102 = vadd.f32 %v2062, %v2101
    %v2103 = vpop.f32.mrf.mxu0
    %v2104 = vpop.f32.mrf.mxu0
    %v2105 = vpop.f32.mrf.mxu0
    %2106 = vdwg.mxu0
    %v2107 = vadd.f32 %v1426, %v2102
    %2108 = vst [vmem:[%s11] sm:$0xff] %v2107
    %v2109 = vld [vmem:[%s12] sm:$0xff]
    %v2110 = vand.u32 2147483647, %v1418
    %v2111 = vand.u32 2147483647, %v1419
    %v2112 = vand.u32 2147483647, %v1420
    %v2113 = vand.u32 2147483647, %v1421
    %v2114 = vand.u32 2147483647, %v1422
    %v2115 = vand.u32 2147483647, %v1423
    %v2116 = vand.u32 2147483647, %v1424
    %v2117 = vand.u32 2147483647, %v1425
    %v2118 = vcombine.low %v2110, %v2112
    %v2119 = vcombine.high %v2110, %v2112
    %v2121 = vunpack.c.l.s4 1983009808
    %v2122 = vunpack.c.0.s8 %v2121
    %v2123 = vlaneseq
    %v2124 = vshrl.u32 %v2123, 7
    %v2125 = vsub.s32 %v2122, %v2124
    %v2126 = vrot.slane %v2118, %v2125
    %v2128 = vunpack.c.l.s4 1983009808
    %v2129 = vunpack.c.0.s8 %v2128
    %v2130 = vlaneseq
    %v2131 = vshrl.u32 %v2130, 7
    %v2132 = vsub.s32 %v2129, %v2131
    %v2133 = vrot.slane %v2119, %v2132
    %v2134 = vcombine.low %v2111, %v2113
    %v2135 = vcombine.high %v2111, %v2113
    %v2137 = vunpack.c.l.s4 1983009808
    %v2138 = vunpack.c.0.s8 %v2137
    %v2139 = vlaneseq
    %v2140 = vshrl.u32 %v2139, 7
    %v2141 = vsub.s32 %v2138, %v2140
    %v2142 = vrot.slane %v2134, %v2141
    %v2144 = vunpack.c.l.s4 1983009808
    %v2145 = vunpack.c.0.s8 %v2144
    %v2146 = vlaneseq
    %v2147 = vshrl.u32 %v2146, 7
    %v2148 = vsub.s32 %v2145, %v2147
    %v2149 = vrot.slane %v2135, %v2148
    %v2150 = vcombine.low %v2114, %v2116
    %v2151 = vcombine.high %v2114, %v2116
    %v2153 = vunpack.c.l.s4 1983009808
    %v2154 = vunpack.c.0.s8 %v2153
    %v2155 = vlaneseq
    %v2156 = vshrl.u32 %v2155, 7
    %v2157 = vsub.s32 %v2154, %v2156
    %v2158 = vrot.slane %v2150, %v2157
    %v2160 = vunpack.c.l.s4 1983009808
    %v2161 = vunpack.c.0.s8 %v2160
    %v2162 = vlaneseq
    %v2163 = vshrl.u32 %v2162, 7
    %v2164 = vsub.s32 %v2161, %v2163
    %v2165 = vrot.slane %v2151, %v2164
    %v2166 = vcombine.low %v2115, %v2117
    %v2167 = vcombine.high %v2115, %v2117
    %v2169 = vunpack.c.l.s4 1983009808
    %v2170 = vunpack.c.0.s8 %v2169
    %v2171 = vlaneseq
    %v2172 = vshrl.u32 %v2171, 7
    %v2173 = vsub.s32 %v2170, %v2172
    %v2174 = vrot.slane %v2166, %v2173
    %v2176 = vunpack.c.l.s4 1983009808
    %v2177 = vunpack.c.0.s8 %v2176
    %v2178 = vlaneseq
    %v2179 = vshrl.u32 %v2178, 7
    %v2180 = vsub.s32 %v2177, %v2179
    %v2181 = vrot.slane %v2167, %v2180
    %v2182 = vcombine.low %v2126, %v2142
    %v2183 = vcombine.high %v2126, %v2142
    %v2185 = vunpack.c.l.s4 1934713408
    %v2186 = vunpack.c.0.s8 %v2185
    %v2187 = vlaneseq
    %v2188 = vshrl.u32 %v2187, 7
    %v2189 = vsub.s32 %v2186, %v2188
    %v2190 = vrot.slane %v2182, %v2189
    %v2192 = vunpack.c.l.s4 1934713408
    %v2193 = vunpack.c.0.s8 %v2192
    %v2194 = vlaneseq
    %v2195 = vshrl.u32 %v2194, 7
    %v2196 = vsub.s32 %v2193, %v2195
    %v2197 = vrot.slane %v2183, %v2196
    %v2198 = vcombine.low %v2133, %v2149
    %v2199 = vcombine.high %v2133, %v2149
    %v2201 = vunpack.c.l.s4 1934713408
    %v2202 = vunpack.c.0.s8 %v2201
    %v2203 = vlaneseq
    %v2204 = vshrl.u32 %v2203, 7
    %v2205 = vsub.s32 %v2202, %v2204
    %v2206 = vrot.slane %v2198, %v2205
    %v2208 = vunpack.c.l.s4 1934713408
    %v2209 = vunpack.c.0.s8 %v2208
    %v2210 = vlaneseq
    %v2211 = vshrl.u32 %v2210, 7
    %v2212 = vsub.s32 %v2209, %v2211
    %v2213 = vrot.slane %v2199, %v2212
    %v2214 = vcombine.low %v2158, %v2174
    %v2215 = vcombine.high %v2158, %v2174
    %v2217 = vunpack.c.l.s4 1934713408
    %v2218 = vunpack.c.0.s8 %v2217
    %v2219 = vlaneseq
    %v2220 = vshrl.u32 %v2219, 7
    %v2221 = vsub.s32 %v2218, %v2220
    %v2222 = vrot.slane %v2214, %v2221
    %v2224 = vunpack.c.l.s4 1934713408
    %v2225 = vunpack.c.0.s8 %v2224
    %v2226 = vlaneseq
    %v2227 = vshrl.u32 %v2226, 7
    %v2228 = vsub.s32 %v2225, %v2227
    %v2229 = vrot.slane %v2215, %v2228
    %v2230 = vcombine.low %v2165, %v2181
    %v2231 = vcombine.high %v2165, %v2181
    %v2233 = vunpack.c.l.s4 1934713408
    %v2234 = vunpack.c.0.s8 %v2233
    %v2235 = vlaneseq
    %v2236 = vshrl.u32 %v2235, 7
    %v2237 = vsub.s32 %v2234, %v2236
    %v2238 = vrot.slane %v2230, %v2237
    %v2240 = vunpack.c.l.s4 1934713408
    %v2241 = vunpack.c.0.s8 %v2240
    %v2242 = vlaneseq
    %v2243 = vshrl.u32 %v2242, 7
    %v2244 = vsub.s32 %v2241, %v2243
    %v2245 = vrot.slane %v2231, %v2244
    %v2246 = vcombine.low %v2190, %v2222
    %v2247 = vcombine.high %v2190, %v2222
    %v2248 = vcombine.low %v2197, %v2229
    %v2249 = vcombine.high %v2197, %v2229
    %v2250 = vcombine.low %v2206, %v2238
    %v2251 = vcombine.high %v2206, %v2238
    %v2252 = vcombine.low %v2213, %v2245
    %v2253 = vcombine.high %v2213, %v2245
    %v2254 = vrot.slane %v2246, 4
    %v2255 = vadd.f32 %v2246, %v2254
    %v2256 = vrot.slane %v2255, 2
    %v2257 = vadd.f32 %v2255, %v2256
    %v2258 = vrot.slane %v2257, 1
    %v2259 = vadd.f32 %v2257, %v2258
    %v2260 = vrot.slane %v2247, 4
    %v2261 = vadd.f32 %v2247, %v2260
    %v2262 = vrot.slane %v2261, 2
    %v2263 = vadd.f32 %v2261, %v2262
    %v2264 = vrot.slane %v2263, 1
    %v2265 = vadd.f32 %v2263, %v2264
    %v2266 = vrot.slane %v2248, 4
    %v2267 = vadd.f32 %v2248, %v2266
    %v2268 = vrot.slane %v2267, 2
    %v2269 = vadd.f32 %v2267, %v2268
    %v2270 = vrot.slane %v2269, 1
    %v2271 = vadd.f32 %v2269, %v2270
    %v2272 = vrot.slane %v2249, 4
    %v2273 = vadd.f32 %v2249, %v2272
    %v2274 = vrot.slane %v2273, 2
    %v2275 = vadd.f32 %v2273, %v2274
    %v2276 = vrot.slane %v2275, 1
    %v2277 = vadd.f32 %v2275, %v2276
    %v2278 = vrot.slane %v2250, 4
    %v2279 = vadd.f32 %v2250, %v2278
    %v2280 = vrot.slane %v2279, 2
    %v2281 = vadd.f32 %v2279, %v2280
    %v2282 = vrot.slane %v2281, 1
    %v2283 = vadd.f32 %v2281, %v2282
    %v2284 = vrot.slane %v2251, 4
    %v2285 = vadd.f32 %v2251, %v2284
    %v2286 = vrot.slane %v2285, 2
    %v2287 = vadd.f32 %v2285, %v2286
    %v2288 = vrot.slane %v2287, 1
    %v2289 = vadd.f32 %v2287, %v2288
    %v2290 = vrot.slane %v2252, 4
    %v2291 = vadd.f32 %v2252, %v2290
    %v2292 = vrot.slane %v2291, 2
    %v2293 = vadd.f32 %v2291, %v2292
    %v2294 = vrot.slane %v2293, 1
    %v2295 = vadd.f32 %v2293, %v2294
    %v2296 = vrot.slane %v2253, 4
    %v2297 = vadd.f32 %v2253, %v2296
    %v2298 = vrot.slane %v2297, 2
    %v2299 = vadd.f32 %v2297, %v2298
    %v2300 = vrot.slane %v2299, 1
    %v2301 = vadd.f32 %v2299, %v2300
    %vm2310 = vcmask 1041409
    %v2311 = vsel %vm2310, %v2265, %v2259
    %vm2312 = vcmask 1042434
    %v2313 = vsel %vm2312, %v2271, %v2311
    %vm2314 = vcmask 1043459
    %v2315 = vsel %vm2314, %v2277, %v2313
    %vm2316 = vcmask 1044484
    %v2317 = vsel %vm2316, %v2283, %v2315
    %vm2318 = vcmask 1045509
    %v2319 = vsel %vm2318, %v2289, %v2317
    %vm2320 = vcmask 1046534
    %v2321 = vsel %vm2320, %v2295, %v2319
    %vm2322 = vcmask 1047559
    %v2323 = vsel %vm2322, %v2301, %v2321
    %v2325 = vadd.f32 %v2109, %v2323
    %2326 = vst [vmem:[%s12] sm:$0xff] %v2325
    // Predicated region
    $region42: #{modified_image_controller_forward.1} parent=1 // pred_check
      _
    $region43: #{modified_image_controller_forward.1} parent=1 // pred_check_branch
      %2328 = sbr.rel (0) target = $region45
    $region44: #{modified_image_controller_forward.1} parent=1 // pred_region
      _
    $region45: #{modified_image_controller_forward.1} parent=1 // pred_fallthru
      _
    // Predicated region
    $region46: #{modified_image_controller_forward.1} parent=1 // pred_check
      _
    $region47: #{modified_image_controller_forward.1} parent=1 // pred_check_branch
      %2330 = sbr.rel (0) target = $region49
    $region48: #{modified_image_controller_forward.1} parent=1 // pred_region
      %s2332 = ssub.s32 128, 128
      %2333 = vsyncadd [#allocation4], %s2332
      %s2335 = sshll.u32 [#allocation3], 4
      %s2336 = int_to_ptr.vmem [resolvable:$true] %s2335
      %2338 = dma.vmem_to_hbm [thread:$0]  %s2336, 128, %s10, [#allocation4]
    $region49: #{modified_image_controller_forward.1} parent=1 // pred_fallthru
      _
    // Predicated region
    $region50: #{modified_image_controller_forward.1} parent=1 // pred_check
      _
    $region51: #{modified_image_controller_forward.1} parent=1 // pred_check_branch
      %2340 = sbr.rel (0) target = $region53
    $region52: #{modified_image_controller_forward.1} parent=1 // pred_region
      _
    $region53: #{modified_image_controller_forward.1} parent=1 // pred_fallthru
      _
    // Predicated region
    $region54: #{modified_image_controller_forward.1} parent=1 // pred_check
      _
    $region55: #{modified_image_controller_forward.1} parent=1 // pred_check_branch
      %2342 = sbr.rel (0) target = $region57
    $region56: #{modified_image_controller_forward.1} parent=1 // pred_region
      _
    $region57: #{modified_image_controller_forward.1} parent=1 // pred_fallthru
      _
    // Predicated region
    $region58: #{modified_image_controller_forward.1} parent=1 // pred_check
      _
    $region59: #{modified_image_controller_forward.1} parent=1 // pred_check_branch
      %2344 = sbr.rel (0) target = $region61
    $region60: #{modified_image_controller_forward.1} parent=1 // pred_region
      _
    $region61: #{modified_image_controller_forward.1} parent=1 // pred_fallthru
      _
    // Predicated region
    $region62: #{modified_image_controller_forward.1} parent=1 // pred_check
      _
    $region63: #{modified_image_controller_forward.1} parent=1 // pred_check_branch
      %2346 = sbr.rel (0) target = $region65
    $region64: #{modified_image_controller_forward.1} parent=1 // pred_region
      %2347 = dma.done [#allocation4], 128
    $region65: #{modified_image_controller_forward.1} parent=1 // pred_fallthru
      _
    // Predicated region
    $region66: #{modified_image_controller_forward.1} parent=1 // pred_check
      _
    $region67: #{modified_image_controller_forward.1} parent=1 // pred_check_branch
      %2349 = sbr.rel (0) target = $region69
    $region68: #{modified_image_controller_forward.1} parent=1 // pred_region
      _
    $region69: #{modified_image_controller_forward.1} parent=1 // pred_fallthru
      _
    // Predicated region
    $region70: #{modified_image_controller_forward.1} parent=1 // pred_check
      _
    $region71: #{modified_image_controller_forward.1} parent=1 // pred_check_branch
      %2351 = sbr.rel (0) target = $region73
    $region72: #{modified_image_controller_forward.1} parent=1 // pred_region
      _
    $region73: #{modified_image_controller_forward.1} parent=1 // pred_fallthru
      _
    %2352 = vsyncpa [#allocation4], 1

</llo_original>
